<compile_context>
chip_gen: v7x
topology: tpu7x:2x2x1
jax: 0.10.0
libtpu: 0.0.40
codegen_flags: <defaults>
</compile_context>

<pallas_src>
import functools

import jax
import jax.numpy as jnp
from jax import lax
from jax.experimental import pallas as pl
from jax.experimental.pallas import tpu as pltpu


# ----------------------------------------------------------------------------
# Fused kernel: 3x (Conv1d 'same' + bias + ReLU) + global avg pool + Linear.
# One grid step processes one batch tile; all activations stay in VMEM/vregs.
# ----------------------------------------------------------------------------
def _fcn_fused_kernel(x_ref,
                      w1_ref, b1_ref,
                      w2_ref, b2_ref,
                      w3_ref, b3_ref,
                      fcwT_ref, fcb_ref,
                      out_ref,
                      pad_ref,
                      *, ksizes, pads, cins, margin):
    # x_ref   : (Bt, L, C_in)              f32  (one batch tile)
    # wN_ref  : (K_N*C_inN, C_outN)        compute dtype (im2col-flat, BN folded)
    # bN_ref  : (1, C_outN)                f32  (folded BN bias incl. conv bias)
    # fcwT_ref: (NC, C3)                   f32  (transposed fc weight, VPU epilogue)
    # fcb_ref : (1, NC)                    f32
    # out_ref : (Bt, NC)                   f32
    # pad_ref : (Bt, L+2*margin, C_max)    f32  persistent padded-activation scratch
    Bt, L, C_in0 = x_ref.shape
    C_max = pad_ref.shape[-1]

    # Zero the padding margins once per step.  Layers only ever write the
    # interior rows, so the margins stay zero for every layer of this step.
    pad_ref[:, :margin, :] = jnp.zeros((Bt, margin, C_max), jnp.float32)
    pad_ref[:, margin + L:, :] = jnp.zeros((Bt, margin, C_max), jnp.float32)

    # Stage the input tile into the interior of the padded scratch.
    pad_ref[:, margin:margin + L, :C_in0] = x_ref[...]

    def conv_bn_relu(w_ref, b_ref, K, C_in, pad_l):
        # Single im2col matmul per layer: (Bt*L, K*C_in) @ (K*C_in, C_out).
        C_out = w_ref.shape[-1]
        base = margin - pad_l
        taps = [pad_ref[:, base + k: base + k + L, :C_in] for k in range(K)]
        tapmat = jnp.concatenate(taps, axis=-1).reshape(Bt * L, K * C_in)
        y = jnp.dot(tapmat.astype(w_ref.dtype), w_ref[...],
                    preferred_element_type=jnp.float32)
        # Folded-BN epilogue: bias add + ReLU, all in f32 (v5e-safe elementwise).
        return jnp.maximum(y + b_ref[...], 0.0).reshape(Bt, L, C_out)

    w_refs = (w1_ref, w2_ref, w3_ref)
    b_refs = (b1_ref, b2_ref, b3_ref)
    h = None
    for i in range(3):
        h = conv_bn_relu(w_refs[i], b_refs[i], ksizes[i], cins[i], pads[i])
        if i < 2:
            # Next layer's input: write straight into the scratch interior.
            pad_ref[:, margin:margin + L, :h.shape[-1]] = h

    # AdaptiveAvgPool1d(1) + Flatten + Linear.  The FC is tiny (Bt x C3 x NC),
    # so do it on the VPU (broadcast-multiply + lane reduce) — no MXU push.
    pooled = jnp.mean(h, axis=1)                                   # (Bt, C3) f32
    logits = jnp.sum(pooled[:, None, :] * fcwT_ref[...][None, :, :],
                     axis=-1) + fcb_ref[...]                       # (Bt, NC) f32
    out_ref[...] = logits.astype(out_ref.dtype)


# ----------------------------------------------------------------------------
# Parameter prep: fold BN scale into conv weights, flatten for im2col, cast
# only the MXU operands.  The FC weight is stored transposed (VPU epilogue).
# ----------------------------------------------------------------------------
def fold_params(params, compute_dtype=jnp.bfloat16):
    convs = []
    ksizes, cins = [], []
    for (w, scale, bias) in params["convs"]:
        K, C_in, C_out = w.shape
        ksizes.append(K)
        cins.append(C_in)
        # layer(h) = relu(conv(h, w)*scale + bias) == relu(conv(h, w*scale) + bias)
        convs.append(((w * scale).reshape(K * C_in, C_out).astype(compute_dtype),
                      bias.astype(jnp.float32)))
    return {"convs": tuple(convs),
            "ksizes": tuple(ksizes),
            "cins": tuple(cins),
            "fc_wT": params["fc_w"].T.astype(jnp.float32),   # (NC, C3)
            "fc_b": params["fc_b"].astype(jnp.float32)}      # (1, NC)


def fcn_forward(x, folded, *, batch_tile=8):
    """x: (B, L, C_in) float32; folded: output of fold_params."""
    B, L, C_in = x.shape
    assert L % 8 == 0, "sequence length must be a multiple of 8 (sublane tile)"
    assert B % batch_tile == 0, "batch must be a multiple of batch_tile"
    convs = folded["convs"]
    assert len(convs) == 3
    ksizes, cins = folded["ksizes"], folded["cins"]
    pads = tuple((k - 1) // 2 for k in ksizes)                # PyTorch 'same'
    max_side = max(max(p, k - 1 - p) for k, p in zip(ksizes, pads))
    margin = max(8, ((max_side + 7) // 8) * 8)                # sublane aligned
    c_outs = tuple(w.shape[-1] for (w, _) in convs)
    c_max = max((C_in,) + c_outs[:-1])                        # widest layer INPUT
    NC = folded["fc_wT"].shape[0]

    kernel = functools.partial(_fcn_fused_kernel, ksizes=ksizes, pads=pads,
                               cins=cins, margin=margin)

    const2 = lambda b: (0, 0)                                 # weights stay resident
    in_specs = [pl.BlockSpec((batch_tile, L, C_in), lambda b: (b, 0, 0))]
    args = [x.astype(jnp.float32)]
    for (w, bias) in convs:
        in_specs += [pl.BlockSpec(w.shape, const2), pl.BlockSpec(bias.shape, const2)]
        args += [w, bias]
    in_specs += [pl.BlockSpec(folded["fc_wT"].shape, const2),
                 pl.BlockSpec(folded["fc_b"].shape, const2)]
    args += [folded["fc_wT"], folded["fc_b"]]

    # Explicit per-step VMEM budget: padded scratch + double-buffered input +
    # resident weights + headroom for the widest layer's im2col temporaries.
    # Clamped to [32 MiB, 48 MiB] so it fits v7x's 64 MiB physical VMEM.
    f32 = 4
    scratch_bytes = batch_tile * (L + 2 * margin) * c_max * f32
    in_bytes = 2 * batch_tile * L * C_in * f32
    w_bytes = sum(w.size * w.dtype.itemsize + b.size * f32 for (w, b) in convs)
    widest_kc = max(k * c for k, c in zip(ksizes, cins))
    tmp_bytes = 4 * batch_tile * L * widest_kc * f32
    est = 2 * (scratch_bytes + in_bytes + w_bytes + tmp_bytes)
    vmem_limit = int(min(max(est, 32 << 20), 48 << 20))

    return pl.pallas_call(
        kernel,
        out_shape=jax.ShapeDtypeStruct((B, NC), jnp.float32),
        grid_spec=pltpu.PrefetchScalarGridSpec(
            num_scalar_prefetch=0,
            grid=(B // batch_tile,),
            in_specs=in_specs,
            out_specs=pl.BlockSpec((batch_tile, NC), lambda b: (b, 0)),
            scratch_shapes=[
                pltpu.VMEM((batch_tile, L + 2 * margin, c_max), jnp.float32)]),
        compiler_params=pltpu.CompilerParams(
            dimension_semantics=("parallel",),
            vmem_limit_bytes=vmem_limit),
    )(*args)


# ----------------------------------------------------------------------------
# Parameter init + plain-JAX reference (lax conv) for validation.
# ----------------------------------------------------------------------------
def init_params(key, c_in, c_out, ksize, class_num):
    params = {"convs": []}
    cin = c_in
    for i, (co, k) in enumerate(zip(c_out, ksize)):
        kw, kb, ks = jax.random.split(jax.random.fold_in(key, i), 3)
        std = (2.0 / (cin * k)) ** 0.5
        w = jax.random.normal(kw, (k, cin, co), jnp.float32) * std
        # Folded-BN parameterization: scale = gamma/sqrt(var+eps),
        # bias = beta + (conv_b - mean)*scale.  Non-trivial values so the fold
        # is actually exercised.
        scale = jax.random.uniform(ks, (1, co), jnp.float32, 0.8, 1.25)
        bias = jax.random.normal(kb, (1, co), jnp.float32) * 0.1
        params["convs"].append((w, scale, bias))
        cin = co
    kfw, kfb = jax.random.split(jax.random.fold_in(key, 100))
    bound = 1.0 / (cin ** 0.5)
    params["fc_w"] = jax.random.uniform(kfw, (cin, class_num), jnp.float32,
                                        -bound, bound)
    params["fc_b"] = jax.random.uniform(kfb, (1, class_num), jnp.float32,
                                        -bound, bound)
    return params


def fcn_reference(x, params):
    h = x
    for (w, scale, bias) in params["convs"]:
        K = w.shape[0]
        pad_l = (K - 1) // 2
        pad_r = (K - 1) - pad_l
        y = lax.conv_general_dilated(
            h, w, window_strides=(1,), padding=[(pad_l, pad_r)],
            dimension_numbers=("NWC", "WIO", "NWC"))
        h = jnp.maximum(y * scale + bias, 0.0)
    pooled = jnp.mean(h, axis=1)
    return pooled @ params["fc_w"] + params["fc_b"]


if __name__ == "__main__":
    # Small config consistent with the module's forward shapes.  B=16 with a
    # batch tile of 8 exercises the batch grid (2 pipelined / core-shardable
    # steps) while staying tiny.
    B, L = 16, 16         # batch, sequence length
    C_IN = 4
    C_OUT = [32, 64, 32]  # config.c_out
    KSIZE = [8, 5, 3]     # config.ksize
    CLASS_NUM = 5         # config.class_num
    B_TILE = 8

    key = jax.random.PRNGKey(0)
    kx, kp = jax.random.split(key)
    x = jax.random.normal(kx, (B, L, C_IN), jnp.float32)     # (B, L, C_in)
    params = init_params(kp, C_IN, C_OUT, KSIZE, CLASS_NUM)
    ref = fcn_reference(x, params)

    # 1) f32 MXU operands: tight check vs the plain-JAX reference.
    out_f32 = jax.block_until_ready(
        fcn_forward(x, fold_params(params, jnp.float32), batch_tile=B_TILE))
    assert out_f32.shape == (B, CLASS_NUM), out_f32.shape
    assert jnp.allclose(out_f32, ref, atol=1e-3, rtol=1e-3), "f32 mismatch vs reference"

    # 2) bf16 MXU operands (full-rate on v5e/v6e/v7x), f32 accumulate + epilogue.
    out_bf16 = jax.block_until_ready(
        fcn_forward(x, fold_params(params, jnp.bfloat16), batch_tile=B_TILE))
    assert out_bf16.shape == (B, CLASS_NUM), out_bf16.shape
    assert jnp.allclose(out_bf16, ref, atol=5e-2, rtol=5e-2), "bf16 mismatch vs reference"

    print("KERNEL_OK")
</pallas_src>

<mosaic_0001>
module attributes {stable_mosaic.version = 11 : i64} {
  func.func @_fcn_fused_kernel(%arg0: i32, %arg1: memref<8x16x4xf32, #tpu.memory_space<vmem>>, %arg2: memref<32x32xf32, #tpu.memory_space<vmem>>, %arg3: memref<1x32xf32, #tpu.memory_space<vmem>>, %arg4: memref<160x64xf32, #tpu.memory_space<vmem>>, %arg5: memref<1x64xf32, #tpu.memory_space<vmem>>, %arg6: memref<192x32xf32, #tpu.memory_space<vmem>>, %arg7: memref<1x32xf32, #tpu.memory_space<vmem>>, %arg8: memref<5x32xf32, #tpu.memory_space<vmem>>, %arg9: memref<1x5xf32, #tpu.memory_space<vmem>>, %arg10: memref<8x5xf32, #tpu.memory_space<vmem>>, %arg11: memref<8x32x64xf32, #tpu.memory_space<vmem>>) attributes {dimension_semantics = [#tpu.dimension_semantics<parallel>], iteration_bounds = array<i64: 2>, scalar_prefetch = 0 : i64, scratch_operands = 1 : i64, tpu.core_type = #tpu.core_type<tc>, window_params = [{transform_indices = @transform_0, window_bounds = array<i64: 8, 16, 4>}, {pipeline_mode = #tpu.pipeline_mode<synchronous>, transform_indices = @transform_1, window_bounds = array<i64: 32, 32>}, {pipeline_mode = #tpu.pipeline_mode<synchronous>, transform_indices = @transform_2, window_bounds = array<i64: 1, 32>}, {pipeline_mode = #tpu.pipeline_mode<synchronous>, transform_indices = @transform_3, window_bounds = array<i64: 160, 64>}, {pipeline_mode = #tpu.pipeline_mode<synchronous>, transform_indices = @transform_4, window_bounds = array<i64: 1, 64>}, {pipeline_mode = #tpu.pipeline_mode<synchronous>, transform_indices = @transform_5, window_bounds = array<i64: 192, 32>}, {pipeline_mode = #tpu.pipeline_mode<synchronous>, transform_indices = @transform_6, window_bounds = array<i64: 1, 32>}, {pipeline_mode = #tpu.pipeline_mode<synchronous>, transform_indices = @transform_7, window_bounds = array<i64: 5, 32>}, {pipeline_mode = #tpu.pipeline_mode<synchronous>, transform_indices = @transform_8, window_bounds = array<i64: 1, 5>}, {transform_indices = @transform_9, window_bounds = array<i64: 8, 5>}]} {
    %cst = arith.constant 0.000000e+00 : f32
    %0 = vector.broadcast %cst : f32 to vector<8x8x64xf32>
    %c0 = arith.constant 0 : index
    %c0_0 = arith.constant 0 : index
    %c0_1 = arith.constant 0 : index
    %1 = vector.load %arg11[%c0, %c0_0, %c0_1] : memref<8x32x64xf32, #tpu.memory_space<vmem>>, vector<8x8x64xf32>
    tpu.vector_store %arg11[%c0, %c0_0, %c0_1], %0 {strides = array<i32>} : memref<8x32x64xf32, #tpu.memory_space<vmem>>, vector<8x8x64xf32>,
    %cst_2 = arith.constant 0.000000e+00 : f32
    %2 = vector.broadcast %cst_2 : f32 to vector<8x8x64xf32>
    %c0_3 = arith.constant 0 : index
    %c24 = arith.constant 24 : index
    %c0_4 = arith.constant 0 : index
    %3 = vector.load %arg11[%c0_3, %c24, %c0_4] : memref<8x32x64xf32, #tpu.memory_space<vmem>>, vector<8x8x64xf32>
    tpu.vector_store %arg11[%c0_3, %c24, %c0_4], %2 {strides = array<i32>} : memref<8x32x64xf32, #tpu.memory_space<vmem>>, vector<8x8x64xf32>,
    %c0_5 = arith.constant 0 : index
    %c0_6 = arith.constant 0 : index
    %c0_7 = arith.constant 0 : index
    %4 = vector.load %arg1[%c0_5, %c0_6, %c0_7] : memref<8x16x4xf32, #tpu.memory_space<vmem>>, vector<8x16x4xf32>
    %c0_8 = arith.constant 0 : index
    %c8 = arith.constant 8 : index
    %c0_9 = arith.constant 0 : index
    %5 = vector.load %arg11[%c0_8, %c8, %c0_9] : memref<8x32x64xf32, #tpu.memory_space<vmem>>, vector<8x16x4xf32>
    tpu.vector_store %arg11[%c0_8, %c8, %c0_9], %4 {strides = array<i32>} : memref<8x32x64xf32, #tpu.memory_space<vmem>>, vector<8x16x4xf32>,
    %c0_10 = arith.constant 0 : index
    %c5 = arith.constant 5 : index
    %c0_11 = arith.constant 0 : index
    %6 = vector.load %arg11[%c0_10, %c5, %c0_11] : memref<8x32x64xf32, #tpu.memory_space<vmem>>, vector<8x16x4xf32>
    %c0_12 = arith.constant 0 : index
    %c6 = arith.constant 6 : index
    %c0_13 = arith.constant 0 : index
    %7 = vector.load %arg11[%c0_12, %c6, %c0_13] : memref<8x32x64xf32, #tpu.memory_space<vmem>>, vector<8x16x4xf32>
    %c0_14 = arith.constant 0 : index
    %c7 = arith.constant 7 : index
    %c0_15 = arith.constant 0 : index
    %8 = vector.load %arg11[%c0_14, %c7, %c0_15] : memref<8x32x64xf32, #tpu.memory_space<vmem>>, vector<8x16x4xf32>
    %c0_16 = arith.constant 0 : index
    %c8_17 = arith.constant 8 : index
    %c0_18 = arith.constant 0 : index
    %9 = vector.load %arg11[%c0_16, %c8_17, %c0_18] : memref<8x32x64xf32, #tpu.memory_space<vmem>>, vector<8x16x4xf32>
    %c0_19 = arith.constant 0 : index
    %c9 = arith.constant 9 : index
    %c0_20 = arith.constant 0 : index
    %10 = vector.load %arg11[%c0_19, %c9, %c0_20] : memref<8x32x64xf32, #tpu.memory_space<vmem>>, vector<8x16x4xf32>
    %c0_21 = arith.constant 0 : index
    %c10 = arith.constant 10 : index
    %c0_22 = arith.constant 0 : index
    %11 = vector.load %arg11[%c0_21, %c10, %c0_22] : memref<8x32x64xf32, #tpu.memory_space<vmem>>, vector<8x16x4xf32>
    %c0_23 = arith.constant 0 : index
    %c11 = arith.constant 11 : index
    %c0_24 = arith.constant 0 : index
    %12 = vector.load %arg11[%c0_23, %c11, %c0_24] : memref<8x32x64xf32, #tpu.memory_space<vmem>>, vector<8x16x4xf32>
    %c0_25 = arith.constant 0 : index
    %c12 = arith.constant 12 : index
    %c0_26 = arith.constant 0 : index
    %13 = vector.load %arg11[%c0_25, %c12, %c0_26] : memref<8x32x64xf32, #tpu.memory_space<vmem>>, vector<8x16x4xf32>
    %14 = tpu.concatenate %6, %7, %8, %9, %10, %11, %12, %13 in 2 : vector<8x16x4xf32>, vector<8x16x4xf32>, vector<8x16x4xf32>, vector<8x16x4xf32>, vector<8x16x4xf32>, vector<8x16x4xf32>, vector<8x16x4xf32>, vector<8x16x4xf32> -> vector<8x16x32xf32>
    %15 = vector.shape_cast %14 : vector<8x16x32xf32> to vector<128x32xf32>
    %c0_27 = arith.constant 0 : index
    %c0_28 = arith.constant 0 : index
    %16 = vector.load %arg2[%c0_27, %c0_28] : memref<32x32xf32, #tpu.memory_space<vmem>>, vector<32x32xf32>
    %cst_29 = arith.constant dense<0.000000e+00> : vector<128x32xf32>
    %17 = tpu.matmul %15, %16, %cst_29 {dimension_numbers = #tpu.dot_dimension_numbers<[1], [0], [0], [1], [0, 0, 1, 1], [], []>} : vector<128x32xf32>, vector<32x32xf32>, vector<128x32xf32> -> vector<128x32xf32>
    %c0_30 = arith.constant 0 : index
    %c0_31 = arith.constant 0 : index
    %18 = vector.load %arg3[%c0_30, %c0_31] : memref<1x32xf32, #tpu.memory_space<vmem>>, vector<1x32xf32>
    %19 = vector.broadcast %18 : vector<1x32xf32> to vector<128x32xf32>
    %20 = arith.addf %17, %19 : vector<128x32xf32>
    %cst_32 = arith.constant 0.000000e+00 : f32
    %21 = vector.broadcast %cst_32 : f32 to vector<128x32xf32>
    %22 = arith.maximumf %20, %21 : vector<128x32xf32>
    %23 = vector.shape_cast %22 : vector<128x32xf32> to vector<8x16x32xf32>
    %c0_33 = arith.constant 0 : index
    %c8_34 = arith.constant 8 : index
    %c0_35 = arith.constant 0 : index
    %24 = vector.load %arg11[%c0_33, %c8_34, %c0_35] : memref<8x32x64xf32, #tpu.memory_space<vmem>>, vector<8x16x32xf32>
    tpu.vector_store %arg11[%c0_33, %c8_34, %c0_35], %23 {strides = array<i32>} : memref<8x32x64xf32, #tpu.memory_space<vmem>>, vector<8x16x32xf32>,
    %c0_36 = arith.constant 0 : index
    %c6_37 = arith.constant 6 : index
    %c0_38 = arith.constant 0 : index
    %25 = vector.load %arg11[%c0_36, %c6_37, %c0_38] : memref<8x32x64xf32, #tpu.memory_space<vmem>>, vector<8x16x32xf32>
    %c0_39 = arith.constant 0 : index
    %c7_40 = arith.constant 7 : index
    %c0_41 = arith.constant 0 : index
    %26 = vector.load %arg11[%c0_39, %c7_40, %c0_41] : memref<8x32x64xf32, #tpu.memory_space<vmem>>, vector<8x16x32xf32>
    %c0_42 = arith.constant 0 : index
    %c8_43 = arith.constant 8 : index
    %c0_44 = arith.constant 0 : index
    %27 = vector.load %arg11[%c0_42, %c8_43, %c0_44] : memref<8x32x64xf32, #tpu.memory_space<vmem>>, vector<8x16x32xf32>
    %c0_45 = arith.constant 0 : index
    %c9_46 = arith.constant 9 : index
    %c0_47 = arith.constant 0 : index
    %28 = vector.load %arg11[%c0_45, %c9_46, %c0_47] : memref<8x32x64xf32, #tpu.memory_space<vmem>>, vector<8x16x32xf32>
    %c0_48 = arith.constant 0 : index
    %c10_49 = arith.constant 10 : index
    %c0_50 = arith.constant 0 : index
    %29 = vector.load %arg11[%c0_48, %c10_49, %c0_50] : memref<8x32x64xf32, #tpu.memory_space<vmem>>, vector<8x16x32xf32>
    %30 = tpu.concatenate %25, %26, %27, %28, %29 in 2 : vector<8x16x32xf32>, vector<8x16x32xf32>, vector<8x16x32xf32>, vector<8x16x32xf32>, vector<8x16x32xf32> -> vector<8x16x160xf32>
    %31 = vector.shape_cast %30 : vector<8x16x160xf32> to vector<128x160xf32>
    %c0_51 = arith.constant 0 : index
    %c0_52 = arith.constant 0 : index
    %32 = vector.load %arg4[%c0_51, %c0_52] : memref<160x64xf32, #tpu.memory_space<vmem>>, vector<160x64xf32>
    %cst_53 = arith.constant dense<0.000000e+00> : vector<128x64xf32>
    %33 = tpu.matmul %31, %32, %cst_53 {dimension_numbers = #tpu.dot_dimension_numbers<[1], [0], [0], [1], [0, 0, 1, 1], [], []>} : vector<128x160xf32>, vector<160x64xf32>, vector<128x64xf32> -> vector<128x64xf32>
    %c0_54 = arith.constant 0 : index
    %c0_55 = arith.constant 0 : index
    %34 = vector.load %arg5[%c0_54, %c0_55] : memref<1x64xf32, #tpu.memory_space<vmem>>, vector<1x64xf32>
    %35 = vector.broadcast %34 : vector<1x64xf32> to vector<128x64xf32>
    %36 = arith.addf %33, %35 : vector<128x64xf32>
    %cst_56 = arith.constant 0.000000e+00 : f32
    %37 = vector.broadcast %cst_56 : f32 to vector<128x64xf32>
    %38 = arith.maximumf %36, %37 : vector<128x64xf32>
    %39 = vector.shape_cast %38 : vector<128x64xf32> to vector<8x16x64xf32>
    %c0_57 = arith.constant 0 : index
    %c8_58 = arith.constant 8 : index
    %c0_59 = arith.constant 0 : index
    %40 = vector.load %arg11[%c0_57, %c8_58, %c0_59] : memref<8x32x64xf32, #tpu.memory_space<vmem>>, vector<8x16x64xf32>
    tpu.vector_store %arg11[%c0_57, %c8_58, %c0_59], %39 {strides = array<i32>} : memref<8x32x64xf32, #tpu.memory_space<vmem>>, vector<8x16x64xf32>,
    %c0_60 = arith.constant 0 : index
    %c7_61 = arith.constant 7 : index
    %c0_62 = arith.constant 0 : index
    %41 = vector.load %arg11[%c0_60, %c7_61, %c0_62] : memref<8x32x64xf32, #tpu.memory_space<vmem>>, vector<8x16x64xf32>
    %c0_63 = arith.constant 0 : index
    %c8_64 = arith.constant 8 : index
    %c0_65 = arith.constant 0 : index
    %42 = vector.load %arg11[%c0_63, %c8_64, %c0_65] : memref<8x32x64xf32, #tpu.memory_space<vmem>>, vector<8x16x64xf32>
    %c0_66 = arith.constant 0 : index
    %c9_67 = arith.constant 9 : index
    %c0_68 = arith.constant 0 : index
    %43 = vector.load %arg11[%c0_66, %c9_67, %c0_68] : memref<8x32x64xf32, #tpu.memory_space<vmem>>, vector<8x16x64xf32>
    %44 = tpu.concatenate %41, %42, %43 in 2 : vector<8x16x64xf32>, vector<8x16x64xf32>, vector<8x16x64xf32> -> vector<8x16x192xf32>
    %45 = vector.shape_cast %44 : vector<8x16x192xf32> to vector<128x192xf32>
    %c0_69 = arith.constant 0 : index
    %c0_70 = arith.constant 0 : index
    %46 = vector.load %arg6[%c0_69, %c0_70] : memref<192x32xf32, #tpu.memory_space<vmem>>, vector<192x32xf32>
    %cst_71 = arith.constant dense<0.000000e+00> : vector<128x32xf32>
    %47 = tpu.matmul %45, %46, %cst_71 {dimension_numbers = #tpu.dot_dimension_numbers<[1], [0], [0], [1], [0, 0, 1, 1], [], []>} : vector<128x192xf32>, vector<192x32xf32>, vector<128x32xf32> -> vector<128x32xf32>
    %c0_72 = arith.constant 0 : index
    %c0_73 = arith.constant 0 : index
    %48 = vector.load %arg7[%c0_72, %c0_73] : memref<1x32xf32, #tpu.memory_space<vmem>>, vector<1x32xf32>
    %49 = vector.broadcast %48 : vector<1x32xf32> to vector<128x32xf32>
    %50 = arith.addf %47, %49 : vector<128x32xf32>
    %cst_74 = arith.constant 0.000000e+00 : f32
    %51 = vector.broadcast %cst_74 : f32 to vector<128x32xf32>
    %52 = arith.maximumf %50, %51 : vector<128x32xf32>
    %53 = vector.shape_cast %52 : vector<128x32xf32> to vector<8x16x32xf32>
    %cst_75 = arith.constant dense<0.000000e+00> : vector<8x32xf32>
    %54 = vector.multi_reduction <add>, %53, %cst_75 [1] : vector<8x16x32xf32> to vector<8x32xf32>
    %cst_76 = arith.constant 1.600000e+01 : f32
    %55 = vector.broadcast %cst_76 : f32 to vector<8x32xf32>
    %56 = arith.divf %54, %55 : vector<8x32xf32>
    %57 = vector.shape_cast %56 : vector<8x32xf32> to vector<8x1x32xf32>
    %c0_77 = arith.constant 0 : index
    %c0_78 = arith.constant 0 : index
    %58 = vector.load %arg8[%c0_77, %c0_78] : memref<5x32xf32, #tpu.memory_space<vmem>>, vector<5x32xf32>
    %59 = vector.shape_cast %58 : vector<5x32xf32> to vector<1x5x32xf32>
    %60 = vector.broadcast %57 : vector<8x1x32xf32> to vector<8x5x32xf32>
    %61 = vector.broadcast %59 : vector<1x5x32xf32> to vector<8x5x32xf32>
    %62 = arith.mulf %60, %61 : vector<8x5x32xf32>
    %cst_79 = arith.constant dense<0.000000e+00> : vector<8x5xf32>
    %63 = vector.multi_reduction <add>, %62, %cst_79 [2] : vector<8x5x32xf32> to vector<8x5xf32>
    %c0_80 = arith.constant 0 : index
    %c0_81 = arith.constant 0 : index
    %64 = vector.load %arg9[%c0_80, %c0_81] : memref<1x5xf32, #tpu.memory_space<vmem>>, vector<1x5xf32>
    %65 = vector.broadcast %64 : vector<1x5xf32> to vector<8x5xf32>
    %66 = arith.addf %63, %65 : vector<8x5xf32>
    %c0_82 = arith.constant 0 : index
    %c0_83 = arith.constant 0 : index
    %67 = vector.load %arg10[%c0_82, %c0_83] : memref<8x5xf32, #tpu.memory_space<vmem>>, vector<8x5xf32>
    tpu.vector_store %arg10[%c0_82, %c0_83], %66 {strides = array<i32>} : memref<8x5xf32, #tpu.memory_space<vmem>>, vector<8x5xf32>,
    return
  }
  func.func @transform_0(%arg0: i32) -> (i32, i32, i32) {
    %c0_i32 = arith.constant 0 : i32
    %c0_i32_0 = arith.constant 0 : i32
    %c0_i32_1 = arith.constant 0 : i32
    return %arg0, %c0_i32, %c0_i32_0 : i32, i32, i32
  }
  func.func @transform_1(%arg0: i32) -> (i32, i32) {
    %c0_i32 = arith.constant 0 : i32
    %c0_i32_0 = arith.constant 0 : i32
    %c0_i32_1 = arith.constant 0 : i32
    return %c0_i32, %c0_i32_0 : i32, i32
  }
  func.func @transform_2(%arg0: i32) -> (i32, i32) {
    %c0_i32 = arith.constant 0 : i32
    %c0_i32_0 = arith.constant 0 : i32
    %c0_i32_1 = arith.constant 0 : i32
    return %c0_i32, %c0_i32_0 : i32, i32
  }
  func.func @transform_3(%arg0: i32) -> (i32, i32) {
    %c0_i32 = arith.constant 0 : i32
    %c0_i32_0 = arith.constant 0 : i32
    %c0_i32_1 = arith.constant 0 : i32
    return %c0_i32, %c0_i32_0 : i32, i32
  }
  func.func @transform_4(%arg0: i32) -> (i32, i32) {
    %c0_i32 = arith.constant 0 : i32
    %c0_i32_0 = arith.constant 0 : i32
    %c0_i32_1 = arith.constant 0 : i32
    return %c0_i32, %c0_i32_0 : i32, i32
  }
  func.func @transform_5(%arg0: i32) -> (i32, i32) {
    %c0_i32 = arith.constant 0 : i32
    %c0_i32_0 = arith.constant 0 : i32
    %c0_i32_1 = arith.constant 0 : i32
    return %c0_i32, %c0_i32_0 : i32, i32
  }
  func.func @transform_6(%arg0: i32) -> (i32, i32) {
    %c0_i32 = arith.constant 0 : i32
    %c0_i32_0 = arith.constant 0 : i32
    %c0_i32_1 = arith.constant 0 : i32
    return %c0_i32, %c0_i32_0 : i32, i32
  }
  func.func @transform_7(%arg0: i32) -> (i32, i32) {
    %c0_i32 = arith.constant 0 : i32
    %c0_i32_0 = arith.constant 0 : i32
    %c0_i32_1 = arith.constant 0 : i32
    return %c0_i32, %c0_i32_0 : i32, i32
  }
  func.func @transform_8(%arg0: i32) -> (i32, i32) {
    %c0_i32 = arith.constant 0 : i32
    %c0_i32_0 = arith.constant 0 : i32
    %c0_i32_1 = arith.constant 0 : i32
    return %c0_i32, %c0_i32_0 : i32, i32
  }
  func.func @transform_9(%arg0: i32) -> (i32, i32) {
    %c0_i32 = arith.constant 0 : i32
    %c0_i32_0 = arith.constant 0 : i32
    return %arg0, %c0_i32 : i32, i32
  }
}

</mosaic_0001>

<llo_original>
// kernel: tpu_custom_call.1
$region0: #{tpu_custom_call.1}
  #allocation0 [shape = 'u32[]', space=smem, size = 0x4, offset = 0x4, fixed_abs, tag = 'smem constant byte address 0x4 - core index']
  #allocation1 [shape = 'u32[144,128]{1,0:T(1,128)}', space=vmem, size = 0x12000, scoped, tag = 'internal scratch']
  #allocation2 [shape = 'f32[8,32,64]{2,1,0:T(8,128)}', space=vmem, size = 0x20000, scoped, tag = 'scratch operand']
  %s0 = inlined_call_operand.vmem [shape: f32[16,16,4], index: 0, kind: input, shape index: {}]
  %s1 = inlined_call_operand.vmem [shape: f32[32,32], index: 1, kind: input, shape index: {}]
  %s2 = inlined_call_operand.vmem [shape: f32[1,32], index: 2, kind: input, shape index: {}]
  %s3 = inlined_call_operand.vmem [shape: f32[160,64], index: 3, kind: input, shape index: {}]
  %s4 = inlined_call_operand.vmem [shape: f32[1,64], index: 4, kind: input, shape index: {}]
  %s5 = inlined_call_operand.vmem [shape: f32[192,32], index: 5, kind: input, shape index: {}]
  %s6 = inlined_call_operand.vmem [shape: f32[1,32], index: 6, kind: input, shape index: {}]
  %s7 = inlined_call_operand.vmem [shape: f32[5,32], index: 7, kind: input, shape index: {}]
  %s8 = inlined_call_operand.vmem [shape: f32[1,5], index: 8, kind: input, shape index: {}]
  %s9 = inlined_call_operand.vmem [shape: f32[16,5], index: 9, kind: output, shape index: {}]
  %s10 = sld [smem:[#allocation0]]
  $region69: #{tpu_custom_call.1} parent=0
    _
  %s12 = ssub.s32 1, %s10
  %s13 = scalar_select 0, %s12, %s10
  loop: start=0, step=1, limit=4
  $region2: #{tpu_custom_call.1} parent=0 // loop_pre_header
    _
  $region3: #{tpu_custom_call.1} parent=0 // loop_header
    %s15 = sphi 0, %s19
    %p16 = scmp.ge.s32.totalorder %s15, 4
    %s25 = sphi 0, %s27
    %s28 = sphi 0, %s25
    %s29 = sphi 0, %s28
    %s45 = sphi 0, %s29
    %s49 = sphi 0, %s49
    %s51 = sphi 0, %s49
    %s52 = sphi 0, %s51
    %s66 = sphi 0, %s52
    %s70 = sphi 0, %s70
    %s72 = sphi 0, %s70
    %s73 = sphi 0, %s72
    %s87 = sphi 0, %s73
    %s91 = sphi 0, %s91
    %s93 = sphi 0, %s91
    %s94 = sphi 0, %s93
    %s108 = sphi 0, %s94
    %s112 = sphi 0, %s112
    %s114 = sphi 0, %s112
    %s115 = sphi 0, %s114
    %s129 = sphi 0, %s115
    %s133 = sphi 0, %s133
    %s135 = sphi 0, %s133
    %s136 = sphi 0, %s135
    %s150 = sphi 0, %s136
    %s154 = sphi 0, %s154
    %s156 = sphi 0, %s154
    %s157 = sphi 0, %s156
    %s171 = sphi 0, %s157
    %s175 = sphi 0, %s175
    %s177 = sphi 0, %s175
    %s178 = sphi 0, %s177
    %s192 = sphi 0, %s178
    %s196 = sphi 0, %s196
    %s198 = sphi 0, %s196
    %s199 = sphi 0, %s198
    %s213 = sphi 0, %s199
    %s219 = sphi 0, %s221
    %s222 = sphi 0, %s219
    %s223 = sphi 0, %s222
    %s239 = sphi 0, %s223
  $region4: #{tpu_custom_call.1} parent=0 // loop_header_branch
    %18 = sbr.rel (%p16) target = $region8
  $region5: #{tpu_custom_call.1} parent=0 // loop_body
    %s20 = ssub.s32 %s15, 1
    %s21 = ssub.s32 %s15, 2
    %s22 = sadd.s32 %s15, 1
    %s23 = ssub.s32 %s15, %s22
    %p24 = scmp.eq.s32.totalorder %s23, 0
    %s26 = sadd.s32 %s25, 1
    %s27 = scalar_select %p24, %s25, %s26
    %p30 = pneg %p24
    %p31 = scmp.eq.s32.totalorder %s15, 1
    %p32 = por %p30, %p31
    %p33 = scmp.ne.s32.totalorder %s25, %s28
    %p34 = scmp.eq.s32.totalorder %s15, 0
    %p35 = por %p33, %p34
    %p36 = scmp.ne.s32.totalorder %s25, %s28
    %p37 = scmp.eq.s32.totalorder %s20, 1
    %p38 = por %p36, %p37
    %p39 = scmp.ne.s32.totalorder %s28, %s29
    %p40 = scmp.eq.s32.totalorder %s20, 0
    %p41 = por %p39, %p40
    %p42 = scmp.ne.s32.totalorder %s28, %s29
    %p43 = scmp.eq.s32.totalorder %s21, 1
    %p44 = por %p42, %p43
    %p46 = scmp.ne.s32.totalorder %s29, %s45
    %p47 = scmp.eq.s32.totalorder %s21, 0
    %p48 = por %p46, %p47
    %s50 = sadd.s32 %s49, 1
    %p53 = scmp.eq.s32.totalorder %s15, 1
    %p54 = scmp.ne.s32.totalorder %s49, %s51
    %p55 = scmp.eq.s32.totalorder %s15, 0
    %p56 = por %p54, %p55
    %p57 = scmp.ne.s32.totalorder %s49, %s51
    %p58 = scmp.eq.s32.totalorder %s20, 1
    %p59 = por %p57, %p58
    %p60 = scmp.ne.s32.totalorder %s51, %s52
    %p61 = scmp.eq.s32.totalorder %s20, 0
    %p62 = por %p60, %p61
    %p63 = scmp.ne.s32.totalorder %s51, %s52
    %p64 = scmp.eq.s32.totalorder %s21, 1
    %p65 = por %p63, %p64
    %p67 = scmp.ne.s32.totalorder %s52, %s66
    %p68 = scmp.eq.s32.totalorder %s21, 0
    %p69 = por %p67, %p68
    %s71 = sadd.s32 %s70, 1
    %p74 = scmp.eq.s32.totalorder %s15, 1
    %p75 = scmp.ne.s32.totalorder %s70, %s72
    %p76 = scmp.eq.s32.totalorder %s15, 0
    %p77 = por %p75, %p76
    %p78 = scmp.ne.s32.totalorder %s70, %s72
    %p79 = scmp.eq.s32.totalorder %s20, 1
    %p80 = por %p78, %p79
    %p81 = scmp.ne.s32.totalorder %s72, %s73
    %p82 = scmp.eq.s32.totalorder %s20, 0
    %p83 = por %p81, %p82
    %p84 = scmp.ne.s32.totalorder %s72, %s73
    %p85 = scmp.eq.s32.totalorder %s21, 1
    %p86 = por %p84, %p85
    %p88 = scmp.ne.s32.totalorder %s73, %s87
    %p89 = scmp.eq.s32.totalorder %s21, 0
    %p90 = por %p88, %p89
    %s92 = sadd.s32 %s91, 1
    %p95 = scmp.eq.s32.totalorder %s15, 1
    %p96 = scmp.ne.s32.totalorder %s91, %s93
    %p97 = scmp.eq.s32.totalorder %s15, 0
    %p98 = por %p96, %p97
    %p99 = scmp.ne.s32.totalorder %s91, %s93
    %p100 = scmp.eq.s32.totalorder %s20, 1
    %p101 = por %p99, %p100
    %p102 = scmp.ne.s32.totalorder %s93, %s94
    %p103 = scmp.eq.s32.totalorder %s20, 0
    %p104 = por %p102, %p103
    %p105 = scmp.ne.s32.totalorder %s93, %s94
    %p106 = scmp.eq.s32.totalorder %s21, 1
    %p107 = por %p105, %p106
    %p109 = scmp.ne.s32.totalorder %s94, %s108
    %p110 = scmp.eq.s32.totalorder %s21, 0
    %p111 = por %p109, %p110
    %s113 = sadd.s32 %s112, 1
    %p116 = scmp.eq.s32.totalorder %s15, 1
    %p117 = scmp.ne.s32.totalorder %s112, %s114
    %p118 = scmp.eq.s32.totalorder %s15, 0
    %p119 = por %p117, %p118
    %p120 = scmp.ne.s32.totalorder %s112, %s114
    %p121 = scmp.eq.s32.totalorder %s20, 1
    %p122 = por %p120, %p121
    %p123 = scmp.ne.s32.totalorder %s114, %s115
    %p124 = scmp.eq.s32.totalorder %s20, 0
    %p125 = por %p123, %p124
    %p126 = scmp.ne.s32.totalorder %s114, %s115
    %p127 = scmp.eq.s32.totalorder %s21, 1
    %p128 = por %p126, %p127
    %p130 = scmp.ne.s32.totalorder %s115, %s129
    %p131 = scmp.eq.s32.totalorder %s21, 0
    %p132 = por %p130, %p131
    %s134 = sadd.s32 %s133, 1
    %p137 = scmp.eq.s32.totalorder %s15, 1
    %p138 = scmp.ne.s32.totalorder %s133, %s135
    %p139 = scmp.eq.s32.totalorder %s15, 0
    %p140 = por %p138, %p139
    %p141 = scmp.ne.s32.totalorder %s133, %s135
    %p142 = scmp.eq.s32.totalorder %s20, 1
    %p143 = por %p141, %p142
    %p144 = scmp.ne.s32.totalorder %s135, %s136
    %p145 = scmp.eq.s32.totalorder %s20, 0
    %p146 = por %p144, %p145
    %p147 = scmp.ne.s32.totalorder %s135, %s136
    %p148 = scmp.eq.s32.totalorder %s21, 1
    %p149 = por %p147, %p148
    %p151 = scmp.ne.s32.totalorder %s136, %s150
    %p152 = scmp.eq.s32.totalorder %s21, 0
    %p153 = por %p151, %p152
    %s155 = sadd.s32 %s154, 1
    %p158 = scmp.eq.s32.totalorder %s15, 1
    %p159 = scmp.ne.s32.totalorder %s154, %s156
    %p160 = scmp.eq.s32.totalorder %s15, 0
    %p161 = por %p159, %p160
    %p162 = scmp.ne.s32.totalorder %s154, %s156
    %p163 = scmp.eq.s32.totalorder %s20, 1
    %p164 = por %p162, %p163
    %p165 = scmp.ne.s32.totalorder %s156, %s157
    %p166 = scmp.eq.s32.totalorder %s20, 0
    %p167 = por %p165, %p166
    %p168 = scmp.ne.s32.totalorder %s156, %s157
    %p169 = scmp.eq.s32.totalorder %s21, 1
    %p170 = por %p168, %p169
    %p172 = scmp.ne.s32.totalorder %s157, %s171
    %p173 = scmp.eq.s32.totalorder %s21, 0
    %p174 = por %p172, %p173
    %s176 = sadd.s32 %s175, 1
    %p179 = scmp.eq.s32.totalorder %s15, 1
    %p180 = scmp.ne.s32.totalorder %s175, %s177
    %p181 = scmp.eq.s32.totalorder %s15, 0
    %p182 = por %p180, %p181
    %p183 = scmp.ne.s32.totalorder %s175, %s177
    %p184 = scmp.eq.s32.totalorder %s20, 1
    %p185 = por %p183, %p184
    %p186 = scmp.ne.s32.totalorder %s177, %s178
    %p187 = scmp.eq.s32.totalorder %s20, 0
    %p188 = por %p186, %p187
    %p189 = scmp.ne.s32.totalorder %s177, %s178
    %p190 = scmp.eq.s32.totalorder %s21, 1
    %p191 = por %p189, %p190
    %p193 = scmp.ne.s32.totalorder %s178, %s192
    %p194 = scmp.eq.s32.totalorder %s21, 0
    %p195 = por %p193, %p194
    %s197 = sadd.s32 %s196, 1
    %p200 = scmp.eq.s32.totalorder %s15, 1
    %p201 = scmp.ne.s32.totalorder %s196, %s198
    %p202 = scmp.eq.s32.totalorder %s15, 0
    %p203 = por %p201, %p202
    %p204 = scmp.ne.s32.totalorder %s196, %s198
    %p205 = scmp.eq.s32.totalorder %s20, 1
    %p206 = por %p204, %p205
    %p207 = scmp.ne.s32.totalorder %s198, %s199
    %p208 = scmp.eq.s32.totalorder %s20, 0
    %p209 = por %p207, %p208
    %p210 = scmp.ne.s32.totalorder %s198, %s199
    %p211 = scmp.eq.s32.totalorder %s21, 1
    %p212 = por %p210, %p211
    %p214 = scmp.ne.s32.totalorder %s199, %s213
    %p215 = scmp.eq.s32.totalorder %s21, 0
    %p216 = por %p214, %p215
    %s217 = ssub.s32 %s15, %s22
    %p218 = scmp.eq.s32.totalorder %s217, 0
    %s220 = sadd.s32 %s219, 1
    %s221 = scalar_select %p218, %s219, %s220
    %p224 = pneg %p218
    %p225 = scmp.eq.s32.totalorder %s15, 1
    %p226 = por %p224, %p225
    %p227 = scmp.ne.s32.totalorder %s219, %s222
    %p228 = scmp.eq.s32.totalorder %s15, 0
    %p229 = por %p227, %p228
    %p230 = scmp.ne.s32.totalorder %s219, %s222
    %p231 = scmp.eq.s32.totalorder %s20, 1
    %p232 = por %p230, %p231
    %p233 = scmp.ne.s32.totalorder %s222, %s223
    %p234 = scmp.eq.s32.totalorder %s20, 0
    %p235 = por %p233, %p234
    %p236 = scmp.ne.s32.totalorder %s222, %s223
    %p237 = scmp.eq.s32.totalorder %s21, 1
    %p238 = por %p236, %p237
    %p240 = scmp.ne.s32.totalorder %s223, %s239
    %p241 = scmp.eq.s32.totalorder %s21, 0
    %p242 = por %p240, %p241
    %p243 = scmp.le.s32.totalorder 1, %s15
    %p244 = scmp.lt.s32.totalorder %s15, 3
    %p245 = pnand %p243, %p244
    %p246 = pneg %p245
    // Predicated region
    $region9: #{tpu_custom_call.1} parent=5 // pred_check
      _
    $region10: #{tpu_custom_call.1} parent=5 // pred_check_branch
      %248 = sbr.rel (%p245) target = $region12
    $region11: #{tpu_custom_call.1} parent=5 // pred_region
      %s249 = ssub.s32 %s15, 1
      // Predicated region
      $region13: #{tpu_custom_call.1} parent=11 // pred_check
        %p250 = pneg %p62
      $region14: #{tpu_custom_call.1} parent=11 // pred_check_branch
        %252 = sbr.rel (%p250) target = $region16
      $region15: #{tpu_custom_call.1} parent=11 // pred_region
        _
      $region16: #{tpu_custom_call.1} parent=11 // pred_fallthru
        _
      // Predicated region
      $region17: #{tpu_custom_call.1} parent=11 // pred_check
        %p253 = pneg %p83
      $region18: #{tpu_custom_call.1} parent=11 // pred_check_branch
        %255 = sbr.rel (%p253) target = $region20
      $region19: #{tpu_custom_call.1} parent=11 // pred_region
        _
      $region20: #{tpu_custom_call.1} parent=11 // pred_fallthru
        _
      // Predicated region
      $region21: #{tpu_custom_call.1} parent=11 // pred_check
        %p256 = pneg %p104
      $region22: #{tpu_custom_call.1} parent=11 // pred_check_branch
        %258 = sbr.rel (%p256) target = $region24
      $region23: #{tpu_custom_call.1} parent=11 // pred_region
        _
      $region24: #{tpu_custom_call.1} parent=11 // pred_fallthru
        _
      // Predicated region
      $region25: #{tpu_custom_call.1} parent=11 // pred_check
        %p259 = pneg %p125
      $region26: #{tpu_custom_call.1} parent=11 // pred_check_branch
        %261 = sbr.rel (%p259) target = $region28
      $region27: #{tpu_custom_call.1} parent=11 // pred_region
        _
      $region28: #{tpu_custom_call.1} parent=11 // pred_fallthru
        _
      // Predicated region
      $region29: #{tpu_custom_call.1} parent=11 // pred_check
        %p262 = pneg %p146
      $region30: #{tpu_custom_call.1} parent=11 // pred_check_branch
        %264 = sbr.rel (%p262) target = $region32
      $region31: #{tpu_custom_call.1} parent=11 // pred_region
        _
      $region32: #{tpu_custom_call.1} parent=11 // pred_fallthru
        _
      // Predicated region
      $region33: #{tpu_custom_call.1} parent=11 // pred_check
        %p265 = pneg %p167
      $region34: #{tpu_custom_call.1} parent=11 // pred_check_branch
        %267 = sbr.rel (%p265) target = $region36
      $region35: #{tpu_custom_call.1} parent=11 // pred_region
        _
      $region36: #{tpu_custom_call.1} parent=11 // pred_fallthru
        _
      // Predicated region
      $region37: #{tpu_custom_call.1} parent=11 // pred_check
        %p268 = pneg %p188
      $region38: #{tpu_custom_call.1} parent=11 // pred_check_branch
        %270 = sbr.rel (%p268) target = $region40
      $region39: #{tpu_custom_call.1} parent=11 // pred_region
        _
      $region40: #{tpu_custom_call.1} parent=11 // pred_fallthru
        _
      // Predicated region
      $region41: #{tpu_custom_call.1} parent=11 // pred_check
        %p271 = pneg %p209
      $region42: #{tpu_custom_call.1} parent=11 // pred_check_branch
        %273 = sbr.rel (%p271) target = $region44
      $region43: #{tpu_custom_call.1} parent=11 // pred_region
        _
      $region44: #{tpu_custom_call.1} parent=11 // pred_fallthru
        _
    $region12: #{tpu_custom_call.1} parent=5 // pred_fallthru
      _
    %p274 = scmp.lt.s32.totalorder %s15, 2
    // Predicated region
    $region45: #{tpu_custom_call.1} parent=5 // pred_check
      %p275 = pneg %p274
    $region46: #{tpu_custom_call.1} parent=5 // pred_check_branch
      %277 = sbr.rel (%p275) target = $region48
    $region47: #{tpu_custom_call.1} parent=5 // pred_region
      // Predicated region
      $region49: #{tpu_custom_call.1} parent=47 // pred_check
        %p278 = pneg %p35
      $region50: #{tpu_custom_call.1} parent=47 // pred_check_branch
        %280 = sbr.rel (%p278) target = $region52
      $region51: #{tpu_custom_call.1} parent=47 // pred_region
        %s281 = smul.u32 8, %s15
        %p282 = scmp.lt.s32.totalorder %s281, 15
        %s283 = scalar_select %p282, %s281, 15
        %s284 = smul.addr %s283, 2
        %s285 = smul.addr %s284, 8
        %s286 = scalar_lea.vmem %s0, %s285
        %s287 = smul.u32 8, %s15
      $region52: #{tpu_custom_call.1} parent=47 // pred_fallthru
        _
    $region48: #{tpu_custom_call.1} parent=5 // pred_fallthru
      _
    %p288 = scmp.le.s32.totalorder 1, %s15
    %p289 = scmp.lt.s32.totalorder %s15, 3
    %p290 = pnand %p288, %p289
    %p291 = pneg %p290
    // Predicated region
    $region53: #{tpu_custom_call.1} parent=5 // pred_check
      _
    $region54: #{tpu_custom_call.1} parent=5 // pred_check_branch
      %293 = sbr.rel (%p290) target = $region56
    $region55: #{tpu_custom_call.1} parent=5 // pred_region
      %s294 = ssub.s32 %s15, 1
      %s295 = smul.u32 8, %s20
      %p296 = scmp.lt.s32.totalorder %s295, 15
      %s297 = scalar_select %p296, %s295, 15
      %s298 = smul.addr %s297, 2
      %s299 = smul.addr %s298, 8
      %s300 = scalar_lea.vmem %s0, %s299
      %p301 = pneg %p41
      %p302 = pneg %p38
      %p303 = pneg %p62
      %p304 = pneg %p59
      %p305 = pneg %p83
      %p306 = pneg %p80
      %p307 = pneg %p104
      %p308 = pneg %p101
      %p309 = pneg %p125
      %p310 = pneg %p122
      %p311 = pneg %p146
      %p312 = pneg %p143
      %p313 = pneg %p167
      %p314 = pneg %p164
      %p315 = pneg %p188
      %p316 = pneg %p185
      %p317 = pneg %p209
      %p318 = pneg %p206
      %p319 = pneg %p235
      %p320 = pneg %p232
      %p321 = scmp.lt.s32.totalorder %s20, 1
      %s322 = scalar_select %p321, %s20, 1
      %s323 = smul.addr %s322, 8
      %s324 = scalar_lea.vmem %s9, %s323
      %s325 = smul.u32 8, %s20
      %p326 = scmp.lt.s32.totalorder %s325, 15
      %s327 = scalar_select %p326, %s325, 15
      %s328 = smul.addr %s327, 2
      %s329 = smul.addr %s328, 8
      %s330 = scalar_lea.vmem %s0, %s329
      %s331 = smul.u32 8, %s20
      %p332 = scmp.lt.s32.totalorder %s20, 1
      %s333 = scalar_select %p332, %s20, 1
      %s334 = smul.addr %s333, 8
      %s335 = scalar_lea.vmem %s9, %s334
      %vm336 = vcmask 523264
      %337 = vst.msk [vmem:[#allocation2] sm:$0xff] %vm336, 0.0
      %338 = vst.msk [vmem:[#allocation2 + $0x20] sm:$0xff] %vm336, 0.0
      %339 = vst.msk [vmem:[#allocation2 + $0x40] sm:$0xff] %vm336, 0.0
      %340 = vst.msk [vmem:[#allocation2 + $0x60] sm:$0xff] %vm336, 0.0
      %341 = vst.msk [vmem:[#allocation2 + $0x80] sm:$0xff] %vm336, 0.0
      %342 = vst.msk [vmem:[#allocation2 + $0xa0] sm:$0xff] %vm336, 0.0
      %343 = vst.msk [vmem:[#allocation2 + $0xc0] sm:$0xff] %vm336, 0.0
      %344 = vst.msk [vmem:[#allocation2 + $0xe0] sm:$0xff] %vm336, 0.0
      %345 = vst.msk [vmem:[#allocation2 + $0x18] sm:$0xff] %vm336, 0.0
      %346 = vst.msk [vmem:[#allocation2 + $0x38] sm:$0xff] %vm336, 0.0
      %347 = vst.msk [vmem:[#allocation2 + $0x58] sm:$0xff] %vm336, 0.0
      %348 = vst.msk [vmem:[#allocation2 + $0x78] sm:$0xff] %vm336, 0.0
      %349 = vst.msk [vmem:[#allocation2 + $0x98] sm:$0xff] %vm336, 0.0
      %350 = vst.msk [vmem:[#allocation2 + $0xb8] sm:$0xff] %vm336, 0.0
      %351 = vst.msk [vmem:[#allocation2 + $0xd8] sm:$0xff] %vm336, 0.0
      %352 = vst.msk [vmem:[#allocation2 + $0xf8] sm:$0xff] %vm336, 0.0
      %v353 = vld [vmem:[%s330] sm:$0xff]
      %v354 = vld [vmem:[%s330 + $0x8] sm:$0xff]
      %v355 = vld [vmem:[%s330 + $0x10] sm:$0xff]
      %v356 = vld [vmem:[%s330 + $0x18] sm:$0xff]
      %v357 = vld [vmem:[%s330 + $0x20] sm:$0xff]
      %v358 = vld [vmem:[%s330 + $0x28] sm:$0xff]
      %v359 = vld [vmem:[%s330 + $0x30] sm:$0xff]
      %v360 = vld [vmem:[%s330 + $0x38] sm:$0xff]
      %v361 = vld [vmem:[%s330 + $0x40] sm:$0xff]
      %v362 = vld [vmem:[%s330 + $0x48] sm:$0xff]
      %v363 = vld [vmem:[%s330 + $0x50] sm:$0xff]
      %v364 = vld [vmem:[%s330 + $0x58] sm:$0xff]
      %v365 = vld [vmem:[%s330 + $0x60] sm:$0xff]
      %v366 = vld [vmem:[%s330 + $0x68] sm:$0xff]
      %v367 = vld [vmem:[%s330 + $0x70] sm:$0xff]
      %v368 = vld [vmem:[%s330 + $0x78] sm:$0xff]
      %vm369 = vcmask 31744
      %370 = vst.msk [vmem:[#allocation2 + $0x8] sm:$0xff] %vm369, %v353
      %371 = vst.msk [vmem:[#allocation2 + $0x10] sm:$0xff] %vm369, %v354
      %372 = vst.msk [vmem:[#allocation2 + $0x28] sm:$0xff] %vm369, %v355
      %373 = vst.msk [vmem:[#allocation2 + $0x30] sm:$0xff] %vm369, %v356
      %374 = vst.msk [vmem:[#allocation2 + $0x48] sm:$0xff] %vm369, %v357
      %375 = vst.msk [vmem:[#allocation2 + $0x50] sm:$0xff] %vm369, %v358
      %376 = vst.msk [vmem:[#allocation2 + $0x68] sm:$0xff] %vm369, %v359
      %377 = vst.msk [vmem:[#allocation2 + $0x70] sm:$0xff] %vm369, %v360
      %378 = vst.msk [vmem:[#allocation2 + $0x88] sm:$0xff] %vm369, %v361
      %379 = vst.msk [vmem:[#allocation2 + $0x90] sm:$0xff] %vm369, %v362
      %380 = vst.msk [vmem:[#allocation2 + $0xa8] sm:$0xff] %vm369, %v363
      %381 = vst.msk [vmem:[#allocation2 + $0xb0] sm:$0xff] %vm369, %v364
      %382 = vst.msk [vmem:[#allocation2 + $0xc8] sm:$0xff] %vm369, %v365
      %383 = vst.msk [vmem:[#allocation2 + $0xd0] sm:$0xff] %vm369, %v366
      %384 = vst.msk [vmem:[#allocation2 + $0xe8] sm:$0xff] %vm369, %v367
      %385 = vst.msk [vmem:[#allocation2 + $0xf0] sm:$0xff] %vm369, %v368
      %v386 = vld [vmem:[#allocation2 + $0x5] sm:$0xff]
      %v387 = vld [vmem:[#allocation2 + $0xd] sm:$0xff]
      %v388 = vld [vmem:[#allocation2 + $0x25] sm:$0xff]
      %v389 = vld [vmem:[#allocation2 + $0x2d] sm:$0xff]
      %v390 = vld [vmem:[#allocation2 + $0x45] sm:$0xff]
      %v391 = vld [vmem:[#allocation2 + $0x4d] sm:$0xff]
      %v392 = vld [vmem:[#allocation2 + $0x65] sm:$0xff]
      %v393 = vld [vmem:[#allocation2 + $0x6d] sm:$0xff]
      %v394 = vld [vmem:[#allocation2 + $0x85] sm:$0xff]
      %v395 = vld [vmem:[#allocation2 + $0x8d] sm:$0xff]
      %v396 = vld [vmem:[#allocation2 + $0xa5] sm:$0xff]
      %v397 = vld [vmem:[#allocation2 + $0xad] sm:$0xff]
      %v398 = vld [vmem:[#allocation2 + $0xc5] sm:$0xff]
      %v399 = vld [vmem:[#allocation2 + $0xcd] sm:$0xff]
      %v400 = vld [vmem:[#allocation2 + $0xe5] sm:$0xff]
      %v401 = vld [vmem:[#allocation2 + $0xed] sm:$0xff]
      %v402 = vld [vmem:[#allocation2 + $0x6] sm:$0xff]
      %v403 = vld [vmem:[#allocation2 + $0xe] sm:$0xff]
      %v404 = vld [vmem:[#allocation2 + $0x26] sm:$0xff]
      %v405 = vld [vmem:[#allocation2 + $0x2e] sm:$0xff]
      %v406 = vld [vmem:[#allocation2 + $0x46] sm:$0xff]
      %v407 = vld [vmem:[#allocation2 + $0x4e] sm:$0xff]
      %v408 = vld [vmem:[#allocation2 + $0x66] sm:$0xff]
      %v409 = vld [vmem:[#allocation2 + $0x6e] sm:$0xff]
      %v410 = vld [vmem:[#allocation2 + $0x86] sm:$0xff]
      %v411 = vld [vmem:[#allocation2 + $0x8e] sm:$0xff]
      %v412 = vld [vmem:[#allocation2 + $0xa6] sm:$0xff]
      %v413 = vld [vmem:[#allocation2 + $0xae] sm:$0xff]
      %v414 = vld [vmem:[#allocation2 + $0xc6] sm:$0xff]
      %v415 = vld [vmem:[#allocation2 + $0xce] sm:$0xff]
      %v416 = vld [vmem:[#allocation2 + $0xe6] sm:$0xff]
      %v417 = vld [vmem:[#allocation2 + $0xee] sm:$0xff]
      %v418 = vld [vmem:[#allocation2 + $0x7] sm:$0xff]
      %v419 = vld [vmem:[#allocation2 + $0xf] sm:$0xff]
      %v420 = vld [vmem:[#allocation2 + $0x27] sm:$0xff]
      %v421 = vld [vmem:[#allocation2 + $0x2f] sm:$0xff]
      %v422 = vld [vmem:[#allocation2 + $0x47] sm:$0xff]
      %v423 = vld [vmem:[#allocation2 + $0x4f] sm:$0xff]
      %v424 = vld [vmem:[#allocation2 + $0x67] sm:$0xff]
      %v425 = vld [vmem:[#allocation2 + $0x6f] sm:$0xff]
      %v426 = vld [vmem:[#allocation2 + $0x87] sm:$0xff]
      %v427 = vld [vmem:[#allocation2 + $0x8f] sm:$0xff]
      %v428 = vld [vmem:[#allocation2 + $0xa7] sm:$0xff]
      %v429 = vld [vmem:[#allocation2 + $0xaf] sm:$0xff]
      %v430 = vld [vmem:[#allocation2 + $0xc7] sm:$0xff]
      %v431 = vld [vmem:[#allocation2 + $0xcf] sm:$0xff]
      %v432 = vld [vmem:[#allocation2 + $0xe7] sm:$0xff]
      %v433 = vld [vmem:[#allocation2 + $0xef] sm:$0xff]
      %v434 = vld [vmem:[#allocation2 + $0x8] sm:$0xff]
      %v435 = vld [vmem:[#allocation2 + $0x10] sm:$0xff]
      %v436 = vld [vmem:[#allocation2 + $0x28] sm:$0xff]
      %v437 = vld [vmem:[#allocation2 + $0x30] sm:$0xff]
      %v438 = vld [vmem:[#allocation2 + $0x48] sm:$0xff]
      %v439 = vld [vmem:[#allocation2 + $0x50] sm:$0xff]
      %v440 = vld [vmem:[#allocation2 + $0x68] sm:$0xff]
      %v441 = vld [vmem:[#allocation2 + $0x70] sm:$0xff]
      %v442 = vld [vmem:[#allocation2 + $0x88] sm:$0xff]
      %v443 = vld [vmem:[#allocation2 + $0x90] sm:$0xff]
      %v444 = vld [vmem:[#allocation2 + $0xa8] sm:$0xff]
      %v445 = vld [vmem:[#allocation2 + $0xb0] sm:$0xff]
      %v446 = vld [vmem:[#allocation2 + $0xc8] sm:$0xff]
      %v447 = vld [vmem:[#allocation2 + $0xd0] sm:$0xff]
      %v448 = vld [vmem:[#allocation2 + $0xe8] sm:$0xff]
      %v449 = vld [vmem:[#allocation2 + $0xf0] sm:$0xff]
      %v450 = vld [vmem:[#allocation2 + $0x9] sm:$0xff]
      %v451 = vld [vmem:[#allocation2 + $0x11] sm:$0xff]
      %v452 = vld [vmem:[#allocation2 + $0x29] sm:$0xff]
      %v453 = vld [vmem:[#allocation2 + $0x31] sm:$0xff]
      %v454 = vld [vmem:[#allocation2 + $0x49] sm:$0xff]
      %v455 = vld [vmem:[#allocation2 + $0x51] sm:$0xff]
      %v456 = vld [vmem:[#allocation2 + $0x69] sm:$0xff]
      %v457 = vld [vmem:[#allocation2 + $0x71] sm:$0xff]
      %v458 = vld [vmem:[#allocation2 + $0x89] sm:$0xff]
      %v459 = vld [vmem:[#allocation2 + $0x91] sm:$0xff]
      %v460 = vld [vmem:[#allocation2 + $0xa9] sm:$0xff]
      %v461 = vld [vmem:[#allocation2 + $0xb1] sm:$0xff]
      %v462 = vld [vmem:[#allocation2 + $0xc9] sm:$0xff]
      %v463 = vld [vmem:[#allocation2 + $0xd1] sm:$0xff]
      %v464 = vld [vmem:[#allocation2 + $0xe9] sm:$0xff]
      %v465 = vld [vmem:[#allocation2 + $0xf1] sm:$0xff]
      %v466 = vld [vmem:[#allocation2 + $0xa] sm:$0xff]
      %v467 = vld [vmem:[#allocation2 + $0x12] sm:$0xff]
      %v468 = vld [vmem:[#allocation2 + $0x2a] sm:$0xff]
      %v469 = vld [vmem:[#allocation2 + $0x32] sm:$0xff]
      %v470 = vld [vmem:[#allocation2 + $0x4a] sm:$0xff]
      %v471 = vld [vmem:[#allocation2 + $0x52] sm:$0xff]
      %v472 = vld [vmem:[#allocation2 + $0x6a] sm:$0xff]
      %v473 = vld [vmem:[#allocation2 + $0x72] sm:$0xff]
      %v474 = vld [vmem:[#allocation2 + $0x8a] sm:$0xff]
      %v475 = vld [vmem:[#allocation2 + $0x92] sm:$0xff]
      %v476 = vld [vmem:[#allocation2 + $0xaa] sm:$0xff]
      %v477 = vld [vmem:[#allocation2 + $0xb2] sm:$0xff]
      %v478 = vld [vmem:[#allocation2 + $0xca] sm:$0xff]
      %v479 = vld [vmem:[#allocation2 + $0xd2] sm:$0xff]
      %v480 = vld [vmem:[#allocation2 + $0xea] sm:$0xff]
      %v481 = vld [vmem:[#allocation2 + $0xf2] sm:$0xff]
      %v482 = vld [vmem:[#allocation2 + $0xb] sm:$0xff]
      %v483 = vld [vmem:[#allocation2 + $0x13] sm:$0xff]
      %v484 = vld [vmem:[#allocation2 + $0x2b] sm:$0xff]
      %v485 = vld [vmem:[#allocation2 + $0x33] sm:$0xff]
      %v486 = vld [vmem:[#allocation2 + $0x4b] sm:$0xff]
      %v487 = vld [vmem:[#allocation2 + $0x53] sm:$0xff]
      %v488 = vld [vmem:[#allocation2 + $0x6b] sm:$0xff]
      %v489 = vld [vmem:[#allocation2 + $0x73] sm:$0xff]
      %v490 = vld [vmem:[#allocation2 + $0x8b] sm:$0xff]
      %v491 = vld [vmem:[#allocation2 + $0x93] sm:$0xff]
      %v492 = vld [vmem:[#allocation2 + $0xab] sm:$0xff]
      %v493 = vld [vmem:[#allocation2 + $0xb3] sm:$0xff]
      %v494 = vld [vmem:[#allocation2 + $0xcb] sm:$0xff]
      %v495 = vld [vmem:[#allocation2 + $0xd3] sm:$0xff]
      %v496 = vld [vmem:[#allocation2 + $0xeb] sm:$0xff]
      %v497 = vld [vmem:[#allocation2 + $0xf3] sm:$0xff]
      %v498 = vld [vmem:[#allocation2 + $0xc] sm:$0xff]
      %v499 = vld [vmem:[#allocation2 + $0x14] sm:$0xff]
      %v500 = vld [vmem:[#allocation2 + $0x2c] sm:$0xff]
      %v501 = vld [vmem:[#allocation2 + $0x34] sm:$0xff]
      %v502 = vld [vmem:[#allocation2 + $0x4c] sm:$0xff]
      %v503 = vld [vmem:[#allocation2 + $0x54] sm:$0xff]
      %v504 = vld [vmem:[#allocation2 + $0x6c] sm:$0xff]
      %v505 = vld [vmem:[#allocation2 + $0x74] sm:$0xff]
      %v506 = vld [vmem:[#allocation2 + $0x8c] sm:$0xff]
      %v507 = vld [vmem:[#allocation2 + $0x94] sm:$0xff]
      %v508 = vld [vmem:[#allocation2 + $0xac] sm:$0xff]
      %v509 = vld [vmem:[#allocation2 + $0xb4] sm:$0xff]
      %v510 = vld [vmem:[#allocation2 + $0xcc] sm:$0xff]
      %v511 = vld [vmem:[#allocation2 + $0xd4] sm:$0xff]
      %v512 = vld [vmem:[#allocation2 + $0xec] sm:$0xff]
      %v513 = vld [vmem:[#allocation2 + $0xf4] sm:$0xff]
      %530 = vrot.lane.b32.xlu0 %v402, 4
      %v531 = vpop.permute.xlu0 %530
      %532 = vrot.lane.b32.xlu0 %v403, 4
      %v533 = vpop.permute.xlu0 %532
      %534 = vrot.lane.b32.xlu0 %v404, 4
      %v535 = vpop.permute.xlu0 %534
      %536 = vrot.lane.b32.xlu0 %v405, 4
      %v537 = vpop.permute.xlu0 %536
      %538 = vrot.lane.b32.xlu0 %v406, 4
      %v539 = vpop.permute.xlu0 %538
      %540 = vrot.lane.b32.xlu0 %v407, 4
      %v541 = vpop.permute.xlu0 %540
      %542 = vrot.lane.b32.xlu0 %v408, 4
      %v543 = vpop.permute.xlu0 %542
      %544 = vrot.lane.b32.xlu0 %v409, 4
      %v545 = vpop.permute.xlu0 %544
      %546 = vrot.lane.b32.xlu0 %v410, 4
      %v547 = vpop.permute.xlu0 %546
      %548 = vrot.lane.b32.xlu0 %v411, 4
      %v549 = vpop.permute.xlu0 %548
      %550 = vrot.lane.b32.xlu0 %v412, 4
      %v551 = vpop.permute.xlu0 %550
      %552 = vrot.lane.b32.xlu0 %v413, 4
      %v553 = vpop.permute.xlu0 %552
      %554 = vrot.lane.b32.xlu0 %v414, 4
      %v555 = vpop.permute.xlu0 %554
      %556 = vrot.lane.b32.xlu0 %v415, 4
      %v557 = vpop.permute.xlu0 %556
      %558 = vrot.lane.b32.xlu0 %v416, 4
      %v559 = vpop.permute.xlu0 %558
      %560 = vrot.lane.b32.xlu0 %v417, 4
      %v561 = vpop.permute.xlu0 %560
      %594 = vrot.lane.b32.xlu0 %v418, 8
      %v595 = vpop.permute.xlu0 %594
      %596 = vrot.lane.b32.xlu0 %v419, 8
      %v597 = vpop.permute.xlu0 %596
      %598 = vrot.lane.b32.xlu0 %v420, 8
      %v599 = vpop.permute.xlu0 %598
      %600 = vrot.lane.b32.xlu0 %v421, 8
      %v601 = vpop.permute.xlu0 %600
      %602 = vrot.lane.b32.xlu0 %v422, 8
      %v603 = vpop.permute.xlu0 %602
      %604 = vrot.lane.b32.xlu0 %v423, 8
      %v605 = vpop.permute.xlu0 %604
      %606 = vrot.lane.b32.xlu0 %v424, 8
      %v607 = vpop.permute.xlu0 %606
      %608 = vrot.lane.b32.xlu0 %v425, 8
      %v609 = vpop.permute.xlu0 %608
      %610 = vrot.lane.b32.xlu0 %v426, 8
      %v611 = vpop.permute.xlu0 %610
      %612 = vrot.lane.b32.xlu0 %v427, 8
      %v613 = vpop.permute.xlu0 %612
      %614 = vrot.lane.b32.xlu0 %v428, 8
      %v615 = vpop.permute.xlu0 %614
      %616 = vrot.lane.b32.xlu0 %v429, 8
      %v617 = vpop.permute.xlu0 %616
      %618 = vrot.lane.b32.xlu0 %v430, 8
      %v619 = vpop.permute.xlu0 %618
      %620 = vrot.lane.b32.xlu0 %v431, 8
      %v621 = vpop.permute.xlu0 %620
      %622 = vrot.lane.b32.xlu0 %v432, 8
      %v623 = vpop.permute.xlu0 %622
      %624 = vrot.lane.b32.xlu0 %v433, 8
      %v625 = vpop.permute.xlu0 %624
      %658 = vrot.lane.b32.xlu0 %v434, 12
      %v659 = vpop.permute.xlu0 %658
      %660 = vrot.lane.b32.xlu0 %v435, 12
      %v661 = vpop.permute.xlu0 %660
      %662 = vrot.lane.b32.xlu0 %v436, 12
      %v663 = vpop.permute.xlu0 %662
      %664 = vrot.lane.b32.xlu0 %v437, 12
      %v665 = vpop.permute.xlu0 %664
      %666 = vrot.lane.b32.xlu0 %v438, 12
      %v667 = vpop.permute.xlu0 %666
      %668 = vrot.lane.b32.xlu0 %v439, 12
      %v669 = vpop.permute.xlu0 %668
      %670 = vrot.lane.b32.xlu0 %v440, 12
      %v671 = vpop.permute.xlu0 %670
      %672 = vrot.lane.b32.xlu0 %v441, 12
      %v673 = vpop.permute.xlu0 %672
      %674 = vrot.lane.b32.xlu0 %v442, 12
      %v675 = vpop.permute.xlu0 %674
      %676 = vrot.lane.b32.xlu0 %v443, 12
      %v677 = vpop.permute.xlu0 %676
      %678 = vrot.lane.b32.xlu0 %v444, 12
      %v679 = vpop.permute.xlu0 %678
      %680 = vrot.lane.b32.xlu0 %v445, 12
      %v681 = vpop.permute.xlu0 %680
      %682 = vrot.lane.b32.xlu0 %v446, 12
      %v683 = vpop.permute.xlu0 %682
      %684 = vrot.lane.b32.xlu0 %v447, 12
      %v685 = vpop.permute.xlu0 %684
      %686 = vrot.lane.b32.xlu0 %v448, 12
      %v687 = vpop.permute.xlu0 %686
      %688 = vrot.lane.b32.xlu0 %v449, 12
      %v689 = vpop.permute.xlu0 %688
      %722 = vrot.lane.b32.xlu0 %v450, 16
      %v723 = vpop.permute.xlu0 %722
      %724 = vrot.lane.b32.xlu0 %v451, 16
      %v725 = vpop.permute.xlu0 %724
      %726 = vrot.lane.b32.xlu0 %v452, 16
      %v727 = vpop.permute.xlu0 %726
      %728 = vrot.lane.b32.xlu0 %v453, 16
      %v729 = vpop.permute.xlu0 %728
      %730 = vrot.lane.b32.xlu0 %v454, 16
      %v731 = vpop.permute.xlu0 %730
      %732 = vrot.lane.b32.xlu0 %v455, 16
      %v733 = vpop.permute.xlu0 %732
      %734 = vrot.lane.b32.xlu0 %v456, 16
      %v735 = vpop.permute.xlu0 %734
      %736 = vrot.lane.b32.xlu0 %v457, 16
      %v737 = vpop.permute.xlu0 %736
      %738 = vrot.lane.b32.xlu0 %v458, 16
      %v739 = vpop.permute.xlu0 %738
      %740 = vrot.lane.b32.xlu0 %v459, 16
      %v741 = vpop.permute.xlu0 %740
      %742 = vrot.lane.b32.xlu0 %v460, 16
      %v743 = vpop.permute.xlu0 %742
      %744 = vrot.lane.b32.xlu0 %v461, 16
      %v745 = vpop.permute.xlu0 %744
      %746 = vrot.lane.b32.xlu0 %v462, 16
      %v747 = vpop.permute.xlu0 %746
      %748 = vrot.lane.b32.xlu0 %v463, 16
      %v749 = vpop.permute.xlu0 %748
      %750 = vrot.lane.b32.xlu0 %v464, 16
      %v751 = vpop.permute.xlu0 %750
      %752 = vrot.lane.b32.xlu0 %v465, 16
      %v753 = vpop.permute.xlu0 %752
      %786 = vrot.lane.b32.xlu0 %v466, 20
      %v787 = vpop.permute.xlu0 %786
      %788 = vrot.lane.b32.xlu0 %v467, 20
      %v789 = vpop.permute.xlu0 %788
      %790 = vrot.lane.b32.xlu0 %v468, 20
      %v791 = vpop.permute.xlu0 %790
      %792 = vrot.lane.b32.xlu0 %v469, 20
      %v793 = vpop.permute.xlu0 %792
      %794 = vrot.lane.b32.xlu0 %v470, 20
      %v795 = vpop.permute.xlu0 %794
      %796 = vrot.lane.b32.xlu0 %v471, 20
      %v797 = vpop.permute.xlu0 %796
      %798 = vrot.lane.b32.xlu0 %v472, 20
      %v799 = vpop.permute.xlu0 %798
      %800 = vrot.lane.b32.xlu0 %v473, 20
      %v801 = vpop.permute.xlu0 %800
      %802 = vrot.lane.b32.xlu0 %v474, 20
      %v803 = vpop.permute.xlu0 %802
      %804 = vrot.lane.b32.xlu0 %v475, 20
      %v805 = vpop.permute.xlu0 %804
      %806 = vrot.lane.b32.xlu0 %v476, 20
      %v807 = vpop.permute.xlu0 %806
      %808 = vrot.lane.b32.xlu0 %v477, 20
      %v809 = vpop.permute.xlu0 %808
      %810 = vrot.lane.b32.xlu0 %v478, 20
      %v811 = vpop.permute.xlu0 %810
      %812 = vrot.lane.b32.xlu0 %v479, 20
      %v813 = vpop.permute.xlu0 %812
      %814 = vrot.lane.b32.xlu0 %v480, 20
      %v815 = vpop.permute.xlu0 %814
      %816 = vrot.lane.b32.xlu0 %v481, 20
      %v817 = vpop.permute.xlu0 %816
      %850 = vrot.lane.b32.xlu0 %v482, 24
      %v851 = vpop.permute.xlu0 %850
      %852 = vrot.lane.b32.xlu0 %v483, 24
      %v853 = vpop.permute.xlu0 %852
      %854 = vrot.lane.b32.xlu0 %v484, 24
      %v855 = vpop.permute.xlu0 %854
      %856 = vrot.lane.b32.xlu0 %v485, 24
      %v857 = vpop.permute.xlu0 %856
      %858 = vrot.lane.b32.xlu0 %v486, 24
      %v859 = vpop.permute.xlu0 %858
      %860 = vrot.lane.b32.xlu0 %v487, 24
      %v861 = vpop.permute.xlu0 %860
      %862 = vrot.lane.b32.xlu0 %v488, 24
      %v863 = vpop.permute.xlu0 %862
      %864 = vrot.lane.b32.xlu0 %v489, 24
      %v865 = vpop.permute.xlu0 %864
      %866 = vrot.lane.b32.xlu0 %v490, 24
      %v867 = vpop.permute.xlu0 %866
      %868 = vrot.lane.b32.xlu0 %v491, 24
      %v869 = vpop.permute.xlu0 %868
      %870 = vrot.lane.b32.xlu0 %v492, 24
      %v871 = vpop.permute.xlu0 %870
      %872 = vrot.lane.b32.xlu0 %v493, 24
      %v873 = vpop.permute.xlu0 %872
      %874 = vrot.lane.b32.xlu0 %v494, 24
      %v875 = vpop.permute.xlu0 %874
      %876 = vrot.lane.b32.xlu0 %v495, 24
      %v877 = vpop.permute.xlu0 %876
      %878 = vrot.lane.b32.xlu0 %v496, 24
      %v879 = vpop.permute.xlu0 %878
      %880 = vrot.lane.b32.xlu0 %v497, 24
      %v881 = vpop.permute.xlu0 %880
      %914 = vrot.lane.b32.xlu0 %v498, 28
      %v915 = vpop.permute.xlu0 %914
      %916 = vrot.lane.b32.xlu0 %v499, 28
      %v917 = vpop.permute.xlu0 %916
      %918 = vrot.lane.b32.xlu0 %v500, 28
      %v919 = vpop.permute.xlu0 %918
      %920 = vrot.lane.b32.xlu0 %v501, 28
      %v921 = vpop.permute.xlu0 %920
      %922 = vrot.lane.b32.xlu0 %v502, 28
      %v923 = vpop.permute.xlu0 %922
      %924 = vrot.lane.b32.xlu0 %v503, 28
      %v925 = vpop.permute.xlu0 %924
      %926 = vrot.lane.b32.xlu0 %v504, 28
      %v927 = vpop.permute.xlu0 %926
      %928 = vrot.lane.b32.xlu0 %v505, 28
      %v929 = vpop.permute.xlu0 %928
      %930 = vrot.lane.b32.xlu0 %v506, 28
      %v931 = vpop.permute.xlu0 %930
      %932 = vrot.lane.b32.xlu0 %v507, 28
      %v933 = vpop.permute.xlu0 %932
      %934 = vrot.lane.b32.xlu0 %v508, 28
      %v935 = vpop.permute.xlu0 %934
      %936 = vrot.lane.b32.xlu0 %v509, 28
      %v937 = vpop.permute.xlu0 %936
      %938 = vrot.lane.b32.xlu0 %v510, 28
      %v939 = vpop.permute.xlu0 %938
      %940 = vrot.lane.b32.xlu0 %v511, 28
      %v941 = vpop.permute.xlu0 %940
      %942 = vrot.lane.b32.xlu0 %v512, 28
      %v943 = vpop.permute.xlu0 %942
      %944 = vrot.lane.b32.xlu0 %v513, 28
      %v945 = vpop.permute.xlu0 %944
      %v962 = vsel %vm369, %v386, %v531
      %v963 = vsel %vm369, %v387, %v533
      %v964 = vsel %vm369, %v388, %v535
      %v965 = vsel %vm369, %v389, %v537
      %v966 = vsel %vm369, %v390, %v539
      %v967 = vsel %vm369, %v391, %v541
      %v968 = vsel %vm369, %v392, %v543
      %v969 = vsel %vm369, %v393, %v545
      %v970 = vsel %vm369, %v394, %v547
      %v971 = vsel %vm369, %v395, %v549
      %v972 = vsel %vm369, %v396, %v551
      %v973 = vsel %vm369, %v397, %v553
      %v974 = vsel %vm369, %v398, %v555
      %v975 = vsel %vm369, %v399, %v557
      %v976 = vsel %vm369, %v400, %v559
      %v977 = vsel %vm369, %v401, %v561
      %vm978 = vcmask 64512
      %v979 = vsel %vm978, %v962, %v595
      %v980 = vsel %vm978, %v963, %v597
      %v981 = vsel %vm978, %v964, %v599
      %v982 = vsel %vm978, %v965, %v601
      %v983 = vsel %vm978, %v966, %v603
      %v984 = vsel %vm978, %v967, %v605
      %v985 = vsel %vm978, %v968, %v607
      %v986 = vsel %vm978, %v969, %v609
      %v987 = vsel %vm978, %v970, %v611
      %v988 = vsel %vm978, %v971, %v613
      %v989 = vsel %vm978, %v972, %v615
      %v990 = vsel %vm978, %v973, %v617
      %v991 = vsel %vm978, %v974, %v619
      %v992 = vsel %vm978, %v975, %v621
      %v993 = vsel %vm978, %v976, %v623
      %v994 = vsel %vm978, %v977, %v625
      %vm995 = vcmask 97280
      %v996 = vsel %vm995, %v979, %v659
      %v997 = vsel %vm995, %v980, %v661
      %v998 = vsel %vm995, %v981, %v663
      %v999 = vsel %vm995, %v982, %v665
      %v1000 = vsel %vm995, %v983, %v667
      %v1001 = vsel %vm995, %v984, %v669
      %v1002 = vsel %vm995, %v985, %v671
      %v1003 = vsel %vm995, %v986, %v673
      %v1004 = vsel %vm995, %v987, %v675
      %v1005 = vsel %vm995, %v988, %v677
      %v1006 = vsel %vm995, %v989, %v679
      %v1007 = vsel %vm995, %v990, %v681
      %v1008 = vsel %vm995, %v991, %v683
      %v1009 = vsel %vm995, %v992, %v685
      %v1010 = vsel %vm995, %v993, %v687
      %v1011 = vsel %vm995, %v994, %v689
      %vm1012 = vcmask 130048
      %v1013 = vsel %vm1012, %v996, %v723
      %v1014 = vsel %vm1012, %v997, %v725
      %v1015 = vsel %vm1012, %v998, %v727
      %v1016 = vsel %vm1012, %v999, %v729
      %v1017 = vsel %vm1012, %v1000, %v731
      %v1018 = vsel %vm1012, %v1001, %v733
      %v1019 = vsel %vm1012, %v1002, %v735
      %v1020 = vsel %vm1012, %v1003, %v737
      %v1021 = vsel %vm1012, %v1004, %v739
      %v1022 = vsel %vm1012, %v1005, %v741
      %v1023 = vsel %vm1012, %v1006, %v743
      %v1024 = vsel %vm1012, %v1007, %v745
      %v1025 = vsel %vm1012, %v1008, %v747
      %v1026 = vsel %vm1012, %v1009, %v749
      %v1027 = vsel %vm1012, %v1010, %v751
      %v1028 = vsel %vm1012, %v1011, %v753
      %vm1029 = vcmask 162816
      %v1030 = vsel %vm1029, %v1013, %v787
      %v1031 = vsel %vm1029, %v1014, %v789
      %v1032 = vsel %vm1029, %v1015, %v791
      %v1033 = vsel %vm1029, %v1016, %v793
      %v1034 = vsel %vm1029, %v1017, %v795
      %v1035 = vsel %vm1029, %v1018, %v797
      %v1036 = vsel %vm1029, %v1019, %v799
      %v1037 = vsel %vm1029, %v1020, %v801
      %v1038 = vsel %vm1029, %v1021, %v803
      %v1039 = vsel %vm1029, %v1022, %v805
      %v1040 = vsel %vm1029, %v1023, %v807
      %v1041 = vsel %vm1029, %v1024, %v809
      %v1042 = vsel %vm1029, %v1025, %v811
      %v1043 = vsel %vm1029, %v1026, %v813
      %v1044 = vsel %vm1029, %v1027, %v815
      %v1045 = vsel %vm1029, %v1028, %v817
      %vm1046 = vcmask 195584
      %v1047 = vsel %vm1046, %v1030, %v851
      %v1048 = vsel %vm1046, %v1031, %v853
      %v1049 = vsel %vm1046, %v1032, %v855
      %v1050 = vsel %vm1046, %v1033, %v857
      %v1051 = vsel %vm1046, %v1034, %v859
      %v1052 = vsel %vm1046, %v1035, %v861
      %v1053 = vsel %vm1046, %v1036, %v863
      %v1054 = vsel %vm1046, %v1037, %v865
      %v1055 = vsel %vm1046, %v1038, %v867
      %v1056 = vsel %vm1046, %v1039, %v869
      %v1057 = vsel %vm1046, %v1040, %v871
      %v1058 = vsel %vm1046, %v1041, %v873
      %v1059 = vsel %vm1046, %v1042, %v875
      %v1060 = vsel %vm1046, %v1043, %v877
      %v1061 = vsel %vm1046, %v1044, %v879
      %v1062 = vsel %vm1046, %v1045, %v881
      %vm1063 = vcmask 228352
      %v1064 = vsel %vm1063, %v1047, %v915
      %v1065 = vsel %vm1063, %v1048, %v917
      %v1066 = vsel %vm1063, %v1049, %v919
      %v1067 = vsel %vm1063, %v1050, %v921
      %v1068 = vsel %vm1063, %v1051, %v923
      %v1069 = vsel %vm1063, %v1052, %v925
      %v1070 = vsel %vm1063, %v1053, %v927
      %v1071 = vsel %vm1063, %v1054, %v929
      %v1072 = vsel %vm1063, %v1055, %v931
      %v1073 = vsel %vm1063, %v1056, %v933
      %v1074 = vsel %vm1063, %v1057, %v935
      %v1075 = vsel %vm1063, %v1058, %v937
      %v1076 = vsel %vm1063, %v1059, %v939
      %v1077 = vsel %vm1063, %v1060, %v941
      %v1078 = vsel %vm1063, %v1061, %v943
      %v1079 = vsel %vm1063, %v1062, %v945
      %v1080 = vld [vmem:[%s1] sm:$0xff]
      %v1081 = vld [vmem:[%s1 + $0x8] sm:$0xff]
      %v1082 = vld [vmem:[%s1 + $0x10] sm:$0xff]
      %v1083 = vld [vmem:[%s1 + $0x18] sm:$0xff]
      %v1084 = vld [vmem:[%s2] sm:$0x1]
      %v1086 = vlaneseq
      %v1087 = vshrl.u32 %v1086, 7
      %v1088 = vsub.s32 0, %v1087
      %v1089 = vrot.slane %v1084, %v1088
      %vm1091 = vcmask 261120
      %v1093 = vsel %vm1091, %v1064, 0
      %v1096 = vsel %vm1091, %v1065, 0
      %v1099 = vsel %vm1091, %v1066, 0
      %v1102 = vsel %vm1091, %v1067, 0
      %v1105 = vsel %vm1091, %v1068, 0
      %v1108 = vsel %vm1091, %v1069, 0
      %v1111 = vsel %vm1091, %v1070, 0
      %v1114 = vsel %vm1091, %v1071, 0
      %v1117 = vsel %vm1091, %v1072, 0
      %v1120 = vsel %vm1091, %v1073, 0
      %v1123 = vsel %vm1091, %v1074, 0
      %v1126 = vsel %vm1091, %v1075, 0
      %v1129 = vsel %vm1091, %v1076, 0
      %v1132 = vsel %vm1091, %v1077, 0
      %v1135 = vsel %vm1091, %v1078, 0
      %v1138 = vsel %vm1091, %v1079, 0
      %1140 = vmatprep.subr.mxu0 0.0
      %1141 = vmatpush1.msra.mxu0 %v1080
      %1142 = vmatprep.subr.mxu0 0.0
      %1143 = vmatpush1.msra.mxu0 %v1081
      %1144 = vmatprep.subr.mxu0 0.0
      %1145 = vmatpush1.msra.mxu0 %v1082
      %1146 = vmatprep.subr.mxu0 0.0
      %1147 = vmatpush1.msra.mxu0 %v1083
      %1148 = vmatprep.subr.mxu0 0.0
      %1149 = vmatpush1.msra.mxu0 0.0
      %1150 = vmatprep.subr.mxu0 0.0
      %1151 = vmatpush1.msra.mxu0 0.0
      %1152 = vmatprep.subr.mxu0 0.0
      %1153 = vmatpush1.msra.mxu0 0.0
      %1154 = vmatprep.subr.mxu0 0.0
      %1155 = vmatpush1.msra.mxu0 0.0
      %1156 = vmatprep.subr.mxu0 0.0
      %1157 = vmatpush1.msra.mxu0 0.0
      %1158 = vmatprep.subr.mxu0 0.0
      %1159 = vmatpush1.msra.mxu0 0.0
      %1160 = vmatprep.subr.mxu0 0.0
      %1161 = vmatpush1.msra.mxu0 0.0
      %1162 = vmatprep.subr.mxu0 0.0
      %1163 = vmatpush1.msra.mxu0 0.0
      %1164 = vmatprep.subr.mxu0 0.0
      %1165 = vmatpush1.msra.mxu0 0.0
      %1166 = vmatprep.subr.mxu0 0.0
      %1167 = vmatpush1.msra.mxu0 0.0
      %1168 = vmatprep.subr.mxu0 0.0
      %1169 = vmatpush1.msra.mxu0 0.0
      %1170 = vmatprep.subr.mxu0 0.0
      %1171 = vmatpush1.msra.mxu0 0.0
      %1172 = vmatprep.subr.mxu0 0.0
      %1173 = vmatpush1.msra.mxu0 0.0
      %1174 = vmatprep.subr.mxu0 0.0
      %1175 = vmatpush1.msra.mxu0 0.0
      %1176 = vmatprep.subr.mxu0 0.0
      %1177 = vmatpush1.msra.mxu0 0.0
      %1178 = vmatprep.subr.mxu0 0.0
      %1179 = vmatpush1.msra.mxu0 0.0
      %1180 = vmatprep.subr.mxu0 0.0
      %1181 = vmatpush1.msra.mxu0 0.0
      %1182 = vmatprep.subr.mxu0 0.0
      %1183 = vmatpush1.msra.mxu0 0.0
      %1184 = vmatprep.subr.mxu0 0.0
      %1185 = vmatpush1.msra.mxu0 0.0
      %1186 = vmatprep.subr.mxu0 0.0
      %1187 = vmatpush1.msra.mxu0 0.0
      %1188 = vmatprep.subr.mxu0 0.0
      %1189 = vmatpush1.msra.mxu0 0.0
      %1190 = vmatprep.subr.mxu0 0.0
      %1191 = vmatpush1.msra.mxu0 0.0
      %1192 = vmatprep.subr.mxu0 0.0
      %1193 = vmatpush1.msra.mxu0 0.0
      %1194 = vmatprep.subr.mxu0 0.0
      %1195 = vmatpush1.msra.mxu0 0.0
      %1196 = vmatprep.subr.mxu0 0.0
      %1197 = vmatpush1.msra.mxu0 0.0
      %1198 = vmatprep.subr.mxu0 0.0
      %1199 = vmatpush1.msra.mxu0 0.0
      %1200 = vmatprep.subr.mxu0 0.0
      %1201 = vmatpush1.msra.mxu0 0.0
      %1202 = vmatprep.subr.mxu0 0.0
      %1203 = vmatpush1.msra.mxu0 0.0
      %1204 = vmatprep.mubr.f32.mxu0 0.0
      %1205 = vmatmul.mubr.f32.gmra.mrb[0].mxu0 %v1093
      %v1206 = vpop.f32.mrb[0].mxu0
      %v1207 = vadd.f32 %v1089, %v1206
      %v1208 = vpop.f32.mrb[0].mxu0
      %1209 = vmatprep.mubr.f32.mxu0 0.0
      %1210 = vmatmul.mubr.f32.gmra.mrb[0].mxu0 %v1096
      %v1211 = vpop.f32.mrb[0].mxu0
      %v1212 = vadd.f32 %v1089, %v1211
      %v1213 = vpop.f32.mrb[0].mxu0
      %1214 = vmatprep.mubr.f32.mxu0 0.0
      %1215 = vmatmul.mubr.f32.gmra.mrb[0].mxu0 %v1099
      %v1216 = vpop.f32.mrb[0].mxu0
      %v1217 = vadd.f32 %v1089, %v1216
      %v1218 = vpop.f32.mrb[0].mxu0
      %1219 = vmatprep.mubr.f32.mxu0 0.0
      %1220 = vmatmul.mubr.f32.gmra.mrb[0].mxu0 %v1102
      %v1221 = vpop.f32.mrb[0].mxu0
      %v1222 = vadd.f32 %v1089, %v1221
      %v1223 = vpop.f32.mrb[0].mxu0
      %1224 = vmatprep.mubr.f32.mxu0 0.0
      %1225 = vmatmul.mubr.f32.gmra.mrb[0].mxu0 %v1105
      %v1226 = vpop.f32.mrb[0].mxu0
      %v1227 = vadd.f32 %v1089, %v1226
      %v1228 = vpop.f32.mrb[0].mxu0
      %1229 = vmatprep.mubr.f32.mxu0 0.0
      %1230 = vmatmul.mubr.f32.gmra.mrb[0].mxu0 %v1108
      %v1231 = vpop.f32.mrb[0].mxu0
      %v1232 = vadd.f32 %v1089, %v1231
      %v1233 = vpop.f32.mrb[0].mxu0
      %1234 = vmatprep.mubr.f32.mxu0 0.0
      %1235 = vmatmul.mubr.f32.gmra.mrb[0].mxu0 %v1111
      %v1236 = vpop.f32.mrb[0].mxu0
      %v1237 = vadd.f32 %v1089, %v1236
      %v1238 = vpop.f32.mrb[0].mxu0
      %1239 = vmatprep.mubr.f32.mxu0 0.0
      %1240 = vmatmul.mubr.f32.gmra.mrb[0].mxu0 %v1114
      %v1241 = vpop.f32.mrb[0].mxu0
      %v1242 = vadd.f32 %v1089, %v1241
      %v1243 = vpop.f32.mrb[0].mxu0
      %1244 = vmatprep.mubr.f32.mxu0 0.0
      %1245 = vmatmul.mubr.f32.gmra.mrb[0].mxu0 %v1117
      %v1246 = vpop.f32.mrb[0].mxu0
      %v1247 = vadd.f32 %v1089, %v1246
      %v1248 = vpop.f32.mrb[0].mxu0
      %1249 = vmatprep.mubr.f32.mxu0 0.0
      %1250 = vmatmul.mubr.f32.gmra.mrb[0].mxu0 %v1120
      %v1251 = vpop.f32.mrb[0].mxu0
      %v1252 = vadd.f32 %v1089, %v1251
      %v1253 = vpop.f32.mrb[0].mxu0
      %1254 = vmatprep.mubr.f32.mxu0 0.0
      %1255 = vmatmul.mubr.f32.gmra.mrb[0].mxu0 %v1123
      %v1256 = vpop.f32.mrb[0].mxu0
      %v1257 = vadd.f32 %v1089, %v1256
      %v1258 = vpop.f32.mrb[0].mxu0
      %1259 = vmatprep.mubr.f32.mxu0 0.0
      %1260 = vmatmul.mubr.f32.gmra.mrb[0].mxu0 %v1126
      %v1261 = vpop.f32.mrb[0].mxu0
      %v1262 = vadd.f32 %v1089, %v1261
      %v1263 = vpop.f32.mrb[0].mxu0
      %1264 = vmatprep.mubr.f32.mxu0 0.0
      %1265 = vmatmul.mubr.f32.gmra.mrb[0].mxu0 %v1129
      %v1266 = vpop.f32.mrb[0].mxu0
      %v1267 = vadd.f32 %v1089, %v1266
      %v1268 = vpop.f32.mrb[0].mxu0
      %1269 = vmatprep.mubr.f32.mxu0 0.0
      %1270 = vmatmul.mubr.f32.gmra.mrb[0].mxu0 %v1132
      %v1271 = vpop.f32.mrb[0].mxu0
      %v1272 = vadd.f32 %v1089, %v1271
      %v1273 = vpop.f32.mrb[0].mxu0
      %1274 = vmatprep.mubr.f32.mxu0 0.0
      %1275 = vmatmul.mubr.f32.gmra.mrb[0].mxu0 %v1135
      %v1276 = vpop.f32.mrb[0].mxu0
      %v1277 = vadd.f32 %v1089, %v1276
      %v1278 = vpop.f32.mrb[0].mxu0
      %1279 = vmatprep.mubr.f32.mxu0 0.0
      %1280 = vmatmul.mubr.f32.gmra.mrb[0].mxu0 %v1138
      %v1281 = vpop.f32.mrb[0].mxu0
      %v1282 = vadd.f32 %v1089, %v1281
      %v1283 = vpop.f32.mrb[0].mxu0
      %1284 = vdwg.mxu0
      %v1285 = vmax.f32 %v1207, 0.0
      %v1286 = vmax.f32 %v1212, 0.0
      %v1287 = vmax.f32 %v1217, 0.0
      %v1288 = vmax.f32 %v1222, 0.0
      %v1289 = vmax.f32 %v1227, 0.0
      %v1290 = vmax.f32 %v1232, 0.0
      %v1291 = vmax.f32 %v1237, 0.0
      %v1292 = vmax.f32 %v1242, 0.0
      %v1293 = vmax.f32 %v1247, 0.0
      %v1294 = vmax.f32 %v1252, 0.0
      %v1295 = vmax.f32 %v1257, 0.0
      %v1296 = vmax.f32 %v1262, 0.0
      %v1297 = vmax.f32 %v1267, 0.0
      %v1298 = vmax.f32 %v1272, 0.0
      %v1299 = vmax.f32 %v1277, 0.0
      %v1300 = vmax.f32 %v1282, 0.0
      %1301 = vst.msk [vmem:[#allocation2 + $0x8] sm:$0xff] %vm1091, %v1285
      %1302 = vst.msk [vmem:[#allocation2 + $0x10] sm:$0xff] %vm1091, %v1286
      %1303 = vst.msk [vmem:[#allocation2 + $0x28] sm:$0xff] %vm1091, %v1287
      %1304 = vst.msk [vmem:[#allocation2 + $0x30] sm:$0xff] %vm1091, %v1288
      %1305 = vst.msk [vmem:[#allocation2 + $0x48] sm:$0xff] %vm1091, %v1289
      %1306 = vst.msk [vmem:[#allocation2 + $0x50] sm:$0xff] %vm1091, %v1290
      %1307 = vst.msk [vmem:[#allocation2 + $0x68] sm:$0xff] %vm1091, %v1291
      %1308 = vst.msk [vmem:[#allocation2 + $0x70] sm:$0xff] %vm1091, %v1292
      %1309 = vst.msk [vmem:[#allocation2 + $0x88] sm:$0xff] %vm1091, %v1293
      %1310 = vst.msk [vmem:[#allocation2 + $0x90] sm:$0xff] %vm1091, %v1294
      %1311 = vst.msk [vmem:[#allocation2 + $0xa8] sm:$0xff] %vm1091, %v1295
      %1312 = vst.msk [vmem:[#allocation2 + $0xb0] sm:$0xff] %vm1091, %v1296
      %1313 = vst.msk [vmem:[#allocation2 + $0xc8] sm:$0xff] %vm1091, %v1297
      %1314 = vst.msk [vmem:[#allocation2 + $0xd0] sm:$0xff] %vm1091, %v1298
      %1315 = vst.msk [vmem:[#allocation2 + $0xe8] sm:$0xff] %vm1091, %v1299
      %1316 = vst.msk [vmem:[#allocation2 + $0xf0] sm:$0xff] %vm1091, %v1300
      %v1317 = vld [vmem:[#allocation2 + $0x6] sm:$0xff]
      %v1318 = vld [vmem:[#allocation2 + $0xe] sm:$0xff]
      %v1319 = vld [vmem:[#allocation2 + $0x26] sm:$0xff]
      %v1320 = vld [vmem:[#allocation2 + $0x2e] sm:$0xff]
      %v1321 = vld [vmem:[#allocation2 + $0x46] sm:$0xff]
      %v1322 = vld [vmem:[#allocation2 + $0x4e] sm:$0xff]
      %v1323 = vld [vmem:[#allocation2 + $0x66] sm:$0xff]
      %v1324 = vld [vmem:[#allocation2 + $0x6e] sm:$0xff]
      %v1325 = vld [vmem:[#allocation2 + $0x86] sm:$0xff]
      %v1326 = vld [vmem:[#allocation2 + $0x8e] sm:$0xff]
      %v1327 = vld [vmem:[#allocation2 + $0xa6] sm:$0xff]
      %v1328 = vld [vmem:[#allocation2 + $0xae] sm:$0xff]
      %v1329 = vld [vmem:[#allocation2 + $0xc6] sm:$0xff]
      %v1330 = vld [vmem:[#allocation2 + $0xce] sm:$0xff]
      %v1331 = vld [vmem:[#allocation2 + $0xe6] sm:$0xff]
      %v1332 = vld [vmem:[#allocation2 + $0xee] sm:$0xff]
      %v1333 = vld [vmem:[#allocation2 + $0x7] sm:$0xff]
      %v1334 = vld [vmem:[#allocation2 + $0xf] sm:$0xff]
      %v1335 = vld [vmem:[#allocation2 + $0x27] sm:$0xff]
      %v1336 = vld [vmem:[#allocation2 + $0x2f] sm:$0xff]
      %v1337 = vld [vmem:[#allocation2 + $0x47] sm:$0xff]
      %v1338 = vld [vmem:[#allocation2 + $0x4f] sm:$0xff]
      %v1339 = vld [vmem:[#allocation2 + $0x67] sm:$0xff]
      %v1340 = vld [vmem:[#allocation2 + $0x6f] sm:$0xff]
      %v1341 = vld [vmem:[#allocation2 + $0x87] sm:$0xff]
      %v1342 = vld [vmem:[#allocation2 + $0x8f] sm:$0xff]
      %v1343 = vld [vmem:[#allocation2 + $0xa7] sm:$0xff]
      %v1344 = vld [vmem:[#allocation2 + $0xaf] sm:$0xff]
      %v1345 = vld [vmem:[#allocation2 + $0xc7] sm:$0xff]
      %v1346 = vld [vmem:[#allocation2 + $0xcf] sm:$0xff]
      %v1347 = vld [vmem:[#allocation2 + $0xe7] sm:$0xff]
      %v1348 = vld [vmem:[#allocation2 + $0xef] sm:$0xff]
      %v1349 = vld [vmem:[#allocation2 + $0x8] sm:$0xff]
      %v1350 = vld [vmem:[#allocation2 + $0x10] sm:$0xff]
      %v1351 = vld [vmem:[#allocation2 + $0x28] sm:$0xff]
      %v1352 = vld [vmem:[#allocation2 + $0x30] sm:$0xff]
      %v1353 = vld [vmem:[#allocation2 + $0x48] sm:$0xff]
      %v1354 = vld [vmem:[#allocation2 + $0x50] sm:$0xff]
      %v1355 = vld [vmem:[#allocation2 + $0x68] sm:$0xff]
      %v1356 = vld [vmem:[#allocation2 + $0x70] sm:$0xff]
      %v1357 = vld [vmem:[#allocation2 + $0x88] sm:$0xff]
      %v1358 = vld [vmem:[#allocation2 + $0x90] sm:$0xff]
      %v1359 = vld [vmem:[#allocation2 + $0xa8] sm:$0xff]
      %v1360 = vld [vmem:[#allocation2 + $0xb0] sm:$0xff]
      %v1361 = vld [vmem:[#allocation2 + $0xc8] sm:$0xff]
      %v1362 = vld [vmem:[#allocation2 + $0xd0] sm:$0xff]
      %v1363 = vld [vmem:[#allocation2 + $0xe8] sm:$0xff]
      %v1364 = vld [vmem:[#allocation2 + $0xf0] sm:$0xff]
      %v1365 = vld [vmem:[#allocation2 + $0x9] sm:$0xff]
      %v1366 = vld [vmem:[#allocation2 + $0x11] sm:$0xff]
      %v1367 = vld [vmem:[#allocation2 + $0x29] sm:$0xff]
      %v1368 = vld [vmem:[#allocation2 + $0x31] sm:$0xff]
      %v1369 = vld [vmem:[#allocation2 + $0x49] sm:$0xff]
      %v1370 = vld [vmem:[#allocation2 + $0x51] sm:$0xff]
      %v1371 = vld [vmem:[#allocation2 + $0x69] sm:$0xff]
      %v1372 = vld [vmem:[#allocation2 + $0x71] sm:$0xff]
      %v1373 = vld [vmem:[#allocation2 + $0x89] sm:$0xff]
      %v1374 = vld [vmem:[#allocation2 + $0x91] sm:$0xff]
      %v1375 = vld [vmem:[#allocation2 + $0xa9] sm:$0xff]
      %v1376 = vld [vmem:[#allocation2 + $0xb1] sm:$0xff]
      %v1377 = vld [vmem:[#allocation2 + $0xc9] sm:$0xff]
      %v1378 = vld [vmem:[#allocation2 + $0xd1] sm:$0xff]
      %v1379 = vld [vmem:[#allocation2 + $0xe9] sm:$0xff]
      %v1380 = vld [vmem:[#allocation2 + $0xf1] sm:$0xff]
      %v1381 = vld [vmem:[#allocation2 + $0xa] sm:$0xff]
      %v1382 = vld [vmem:[#allocation2 + $0x12] sm:$0xff]
      %v1383 = vld [vmem:[#allocation2 + $0x2a] sm:$0xff]
      %v1384 = vld [vmem:[#allocation2 + $0x32] sm:$0xff]
      %v1385 = vld [vmem:[#allocation2 + $0x4a] sm:$0xff]
      %v1386 = vld [vmem:[#allocation2 + $0x52] sm:$0xff]
      %v1387 = vld [vmem:[#allocation2 + $0x6a] sm:$0xff]
      %v1388 = vld [vmem:[#allocation2 + $0x72] sm:$0xff]
      %v1389 = vld [vmem:[#allocation2 + $0x8a] sm:$0xff]
      %v1390 = vld [vmem:[#allocation2 + $0x92] sm:$0xff]
      %v1391 = vld [vmem:[#allocation2 + $0xaa] sm:$0xff]
      %v1392 = vld [vmem:[#allocation2 + $0xb2] sm:$0xff]
      %v1393 = vld [vmem:[#allocation2 + $0xca] sm:$0xff]
      %v1394 = vld [vmem:[#allocation2 + $0xd2] sm:$0xff]
      %v1395 = vld [vmem:[#allocation2 + $0xea] sm:$0xff]
      %v1396 = vld [vmem:[#allocation2 + $0xf2] sm:$0xff]
      %1413 = vrot.lane.b32.xlu0 %v1333, 32
      %v1414 = vpop.permute.xlu0 %1413
      %1415 = vrot.lane.b32.xlu0 %v1334, 32
      %v1416 = vpop.permute.xlu0 %1415
      %1417 = vrot.lane.b32.xlu0 %v1335, 32
      %v1418 = vpop.permute.xlu0 %1417
      %1419 = vrot.lane.b32.xlu0 %v1336, 32
      %v1420 = vpop.permute.xlu0 %1419
      %1421 = vrot.lane.b32.xlu0 %v1337, 32
      %v1422 = vpop.permute.xlu0 %1421
      %1423 = vrot.lane.b32.xlu0 %v1338, 32
      %v1424 = vpop.permute.xlu0 %1423
      %1425 = vrot.lane.b32.xlu0 %v1339, 32
      %v1426 = vpop.permute.xlu0 %1425
      %1427 = vrot.lane.b32.xlu0 %v1340, 32
      %v1428 = vpop.permute.xlu0 %1427
      %1429 = vrot.lane.b32.xlu0 %v1341, 32
      %v1430 = vpop.permute.xlu0 %1429
      %1431 = vrot.lane.b32.xlu0 %v1342, 32
      %v1432 = vpop.permute.xlu0 %1431
      %1433 = vrot.lane.b32.xlu0 %v1343, 32
      %v1434 = vpop.permute.xlu0 %1433
      %1435 = vrot.lane.b32.xlu0 %v1344, 32
      %v1436 = vpop.permute.xlu0 %1435
      %1437 = vrot.lane.b32.xlu0 %v1345, 32
      %v1438 = vpop.permute.xlu0 %1437
      %1439 = vrot.lane.b32.xlu0 %v1346, 32
      %v1440 = vpop.permute.xlu0 %1439
      %1441 = vrot.lane.b32.xlu0 %v1347, 32
      %v1442 = vpop.permute.xlu0 %1441
      %1443 = vrot.lane.b32.xlu0 %v1348, 32
      %v1444 = vpop.permute.xlu0 %1443
      %1477 = vrot.lane.b32.xlu0 %v1349, 64
      %v1478 = vpop.permute.xlu0 %1477
      %1479 = vrot.lane.b32.xlu0 %v1350, 64
      %v1480 = vpop.permute.xlu0 %1479
      %1481 = vrot.lane.b32.xlu0 %v1351, 64
      %v1482 = vpop.permute.xlu0 %1481
      %1483 = vrot.lane.b32.xlu0 %v1352, 64
      %v1484 = vpop.permute.xlu0 %1483
      %1485 = vrot.lane.b32.xlu0 %v1353, 64
      %v1486 = vpop.permute.xlu0 %1485
      %1487 = vrot.lane.b32.xlu0 %v1354, 64
      %v1488 = vpop.permute.xlu0 %1487
      %1489 = vrot.lane.b32.xlu0 %v1355, 64
      %v1490 = vpop.permute.xlu0 %1489
      %1491 = vrot.lane.b32.xlu0 %v1356, 64
      %v1492 = vpop.permute.xlu0 %1491
      %1493 = vrot.lane.b32.xlu0 %v1357, 64
      %v1494 = vpop.permute.xlu0 %1493
      %1495 = vrot.lane.b32.xlu0 %v1358, 64
      %v1496 = vpop.permute.xlu0 %1495
      %1497 = vrot.lane.b32.xlu0 %v1359, 64
      %v1498 = vpop.permute.xlu0 %1497
      %1499 = vrot.lane.b32.xlu0 %v1360, 64
      %v1500 = vpop.permute.xlu0 %1499
      %1501 = vrot.lane.b32.xlu0 %v1361, 64
      %v1502 = vpop.permute.xlu0 %1501
      %1503 = vrot.lane.b32.xlu0 %v1362, 64
      %v1504 = vpop.permute.xlu0 %1503
      %1505 = vrot.lane.b32.xlu0 %v1363, 64
      %v1506 = vpop.permute.xlu0 %1505
      %1507 = vrot.lane.b32.xlu0 %v1364, 64
      %v1508 = vpop.permute.xlu0 %1507
      %1541 = vrot.lane.b32.xlu0 %v1365, 96
      %v1542 = vpop.permute.xlu0 %1541
      %1543 = vrot.lane.b32.xlu0 %v1366, 96
      %v1544 = vpop.permute.xlu0 %1543
      %1545 = vrot.lane.b32.xlu0 %v1367, 96
      %v1546 = vpop.permute.xlu0 %1545
      %1547 = vrot.lane.b32.xlu0 %v1368, 96
      %v1548 = vpop.permute.xlu0 %1547
      %1549 = vrot.lane.b32.xlu0 %v1369, 96
      %v1550 = vpop.permute.xlu0 %1549
      %1551 = vrot.lane.b32.xlu0 %v1370, 96
      %v1552 = vpop.permute.xlu0 %1551
      %1553 = vrot.lane.b32.xlu0 %v1371, 96
      %v1554 = vpop.permute.xlu0 %1553
      %1555 = vrot.lane.b32.xlu0 %v1372, 96
      %v1556 = vpop.permute.xlu0 %1555
      %1557 = vrot.lane.b32.xlu0 %v1373, 96
      %v1558 = vpop.permute.xlu0 %1557
      %1559 = vrot.lane.b32.xlu0 %v1374, 96
      %v1560 = vpop.permute.xlu0 %1559
      %1561 = vrot.lane.b32.xlu0 %v1375, 96
      %v1562 = vpop.permute.xlu0 %1561
      %1563 = vrot.lane.b32.xlu0 %v1376, 96
      %v1564 = vpop.permute.xlu0 %1563
      %1565 = vrot.lane.b32.xlu0 %v1377, 96
      %v1566 = vpop.permute.xlu0 %1565
      %1567 = vrot.lane.b32.xlu0 %v1378, 96
      %v1568 = vpop.permute.xlu0 %1567
      %1569 = vrot.lane.b32.xlu0 %v1379, 96
      %v1570 = vpop.permute.xlu0 %1569
      %1571 = vrot.lane.b32.xlu0 %v1380, 96
      %v1572 = vpop.permute.xlu0 %1571
      %v1589 = vsel %vm1091, %v1317, %v1414
      %v1590 = vsel %vm1091, %v1318, %v1416
      %v1591 = vsel %vm1091, %v1319, %v1418
      %v1592 = vsel %vm1091, %v1320, %v1420
      %v1593 = vsel %vm1091, %v1321, %v1422
      %v1594 = vsel %vm1091, %v1322, %v1424
      %v1595 = vsel %vm1091, %v1323, %v1426
      %v1596 = vsel %vm1091, %v1324, %v1428
      %v1597 = vsel %vm1091, %v1325, %v1430
      %v1598 = vsel %vm1091, %v1326, %v1432
      %v1599 = vsel %vm1091, %v1327, %v1434
      %v1600 = vsel %vm1091, %v1328, %v1436
      %v1601 = vsel %vm1091, %v1329, %v1438
      %v1602 = vsel %vm1091, %v1330, %v1440
      %v1603 = vsel %vm1091, %v1331, %v1442
      %v1604 = vsel %vm1091, %v1332, %v1444
      %v1605 = vsel %vm336, %v1589, %v1478
      %v1606 = vsel %vm336, %v1590, %v1480
      %v1607 = vsel %vm336, %v1591, %v1482
      %v1608 = vsel %vm336, %v1592, %v1484
      %v1609 = vsel %vm336, %v1593, %v1486
      %v1610 = vsel %vm336, %v1594, %v1488
      %v1611 = vsel %vm336, %v1595, %v1490
      %v1612 = vsel %vm336, %v1596, %v1492
      %v1613 = vsel %vm336, %v1597, %v1494
      %v1614 = vsel %vm336, %v1598, %v1496
      %v1615 = vsel %vm336, %v1599, %v1498
      %v1616 = vsel %vm336, %v1600, %v1500
      %v1617 = vsel %vm336, %v1601, %v1502
      %v1618 = vsel %vm336, %v1602, %v1504
      %v1619 = vsel %vm336, %v1603, %v1506
      %v1620 = vsel %vm336, %v1604, %v1508
      %vm1621 = vcmask 785408
      %v1622 = vsel %vm1621, %v1605, %v1542
      %v1623 = vsel %vm1621, %v1606, %v1544
      %v1624 = vsel %vm1621, %v1607, %v1546
      %v1625 = vsel %vm1621, %v1608, %v1548
      %v1626 = vsel %vm1621, %v1609, %v1550
      %v1627 = vsel %vm1621, %v1610, %v1552
      %v1628 = vsel %vm1621, %v1611, %v1554
      %v1629 = vsel %vm1621, %v1612, %v1556
      %v1630 = vsel %vm1621, %v1613, %v1558
      %v1631 = vsel %vm1621, %v1614, %v1560
      %v1632 = vsel %vm1621, %v1615, %v1562
      %v1633 = vsel %vm1621, %v1616, %v1564
      %v1634 = vsel %vm1621, %v1617, %v1566
      %v1635 = vsel %vm1621, %v1618, %v1568
      %v1636 = vsel %vm1621, %v1619, %v1570
      %v1637 = vsel %vm1621, %v1620, %v1572
      %v1638 = vld [vmem:[%s3] sm:$0xff]
      %v1639 = vld [vmem:[%s3 + $0x8] sm:$0xff]
      %v1640 = vld [vmem:[%s3 + $0x10] sm:$0xff]
      %v1641 = vld [vmem:[%s3 + $0x18] sm:$0xff]
      %v1642 = vld [vmem:[%s3 + $0x20] sm:$0xff]
      %v1643 = vld [vmem:[%s3 + $0x28] sm:$0xff]
      %v1644 = vld [vmem:[%s3 + $0x30] sm:$0xff]
      %v1645 = vld [vmem:[%s3 + $0x38] sm:$0xff]
      %v1646 = vld [vmem:[%s3 + $0x40] sm:$0xff]
      %v1647 = vld [vmem:[%s3 + $0x48] sm:$0xff]
      %v1648 = vld [vmem:[%s3 + $0x50] sm:$0xff]
      %v1649 = vld [vmem:[%s3 + $0x58] sm:$0xff]
      %v1650 = vld [vmem:[%s3 + $0x60] sm:$0xff]
      %v1651 = vld [vmem:[%s3 + $0x68] sm:$0xff]
      %v1652 = vld [vmem:[%s3 + $0x70] sm:$0xff]
      %v1653 = vld [vmem:[%s3 + $0x78] sm:$0xff]
      %v1654 = vld [vmem:[%s3 + $0x80] sm:$0xff]
      %v1655 = vld [vmem:[%s3 + $0x88] sm:$0xff]
      %v1656 = vld [vmem:[%s3 + $0x90] sm:$0xff]
      %v1657 = vld [vmem:[%s3 + $0x98] sm:$0xff]
      %v1658 = vld [vmem:[%s4] sm:$0x1]
      %v1660 = vlaneseq
      %v1661 = vshrl.u32 %v1660, 7
      %v1662 = vsub.s32 0, %v1661
      %v1663 = vrot.slane %v1658, %v1662
      %v1666 = vsel %vm1091, %v1381, 0
      %v1669 = vsel %vm1091, %v1382, 0
      %v1672 = vsel %vm1091, %v1383, 0
      %v1675 = vsel %vm1091, %v1384, 0
      %v1678 = vsel %vm1091, %v1385, 0
      %v1681 = vsel %vm1091, %v1386, 0
      %v1684 = vsel %vm1091, %v1387, 0
      %v1687 = vsel %vm1091, %v1388, 0
      %v1690 = vsel %vm1091, %v1389, 0
      %v1693 = vsel %vm1091, %v1390, 0
      %v1696 = vsel %vm1091, %v1391, 0
      %v1699 = vsel %vm1091, %v1392, 0
      %v1702 = vsel %vm1091, %v1393, 0
      %v1705 = vsel %vm1091, %v1394, 0
      %v1708 = vsel %vm1091, %v1395, 0
      %v1711 = vsel %vm1091, %v1396, 0
      %1713 = vmatprep.subr.mxu0 0.0
      %1714 = vmatpush1.msra.mxu0 %v1638
      %1715 = vmatprep.subr.mxu0 0.0
      %1716 = vmatpush1.msra.mxu0 %v1639
      %1717 = vmatprep.subr.mxu0 0.0
      %1718 = vmatpush1.msra.mxu0 %v1640
      %1719 = vmatprep.subr.mxu0 0.0
      %1720 = vmatpush1.msra.mxu0 %v1641
      %1721 = vmatprep.subr.mxu0 0.0
      %1722 = vmatpush1.msra.mxu0 %v1642
      %1723 = vmatprep.subr.mxu0 0.0
      %1724 = vmatpush1.msra.mxu0 %v1643
      %1725 = vmatprep.subr.mxu0 0.0
      %1726 = vmatpush1.msra.mxu0 %v1644
      %1727 = vmatprep.subr.mxu0 0.0
      %1728 = vmatpush1.msra.mxu0 %v1645
      %1729 = vmatprep.subr.mxu0 0.0
      %1730 = vmatpush1.msra.mxu0 %v1646
      %1731 = vmatprep.subr.mxu0 0.0
      %1732 = vmatpush1.msra.mxu0 %v1647
      %1733 = vmatprep.subr.mxu0 0.0
      %1734 = vmatpush1.msra.mxu0 %v1648
      %1735 = vmatprep.subr.mxu0 0.0
      %1736 = vmatpush1.msra.mxu0 %v1649
      %1737 = vmatprep.subr.mxu0 0.0
      %1738 = vmatpush1.msra.mxu0 %v1650
      %1739 = vmatprep.subr.mxu0 0.0
      %1740 = vmatpush1.msra.mxu0 %v1651
      %1741 = vmatprep.subr.mxu0 0.0
      %1742 = vmatpush1.msra.mxu0 %v1652
      %1743 = vmatprep.subr.mxu0 0.0
      %1744 = vmatpush1.msra.mxu0 %v1653
      %1745 = vmatprep.subr.mxu0 0.0
      %1746 = vmatpush1.msra.mxu0 %v1654
      %1747 = vmatprep.subr.mxu0 0.0
      %1748 = vmatpush1.msra.mxu0 %v1655
      %1749 = vmatprep.subr.mxu0 0.0
      %1750 = vmatpush1.msra.mxu0 %v1656
      %1751 = vmatprep.subr.mxu0 0.0
      %1752 = vmatpush1.msra.mxu0 %v1657
      %1753 = vmatprep.subr.mxu0 0.0
      %1754 = vmatpush1.msra.mxu0 0.0
      %1755 = vmatprep.subr.mxu0 0.0
      %1756 = vmatpush1.msra.mxu0 0.0
      %1757 = vmatprep.subr.mxu0 0.0
      %1758 = vmatpush1.msra.mxu0 0.0
      %1759 = vmatprep.subr.mxu0 0.0
      %1760 = vmatpush1.msra.mxu0 0.0
      %1761 = vmatprep.subr.mxu0 0.0
      %1762 = vmatpush1.msra.mxu0 0.0
      %1763 = vmatprep.subr.mxu0 0.0
      %1764 = vmatpush1.msra.mxu0 0.0
      %1765 = vmatprep.subr.mxu0 0.0
      %1766 = vmatpush1.msra.mxu0 0.0
      %1767 = vmatprep.subr.mxu0 0.0
      %1768 = vmatpush1.msra.mxu0 0.0
      %1769 = vmatprep.subr.mxu0 0.0
      %1770 = vmatpush1.msra.mxu0 0.0
      %1771 = vmatprep.subr.mxu0 0.0
      %1772 = vmatpush1.msra.mxu0 0.0
      %1773 = vmatprep.subr.mxu0 0.0
      %1774 = vmatpush1.msra.mxu0 0.0
      %1775 = vmatprep.subr.mxu0 0.0
      %1776 = vmatpush1.msra.mxu0 0.0
      %1777 = vmatprep.mubr.f32.mxu0 %v1666
      %1778 = vmatmul.mubr.f32.gmra.mrb[0].mxu0 %v1622
      %v1779 = vpop.f32.mrb[0].mxu0
      %v1780 = vadd.f32 %v1663, %v1779
      %v1781 = vpop.f32.mrb[0].mxu0
      %1782 = vmatprep.mubr.f32.mxu0 %v1669
      %1783 = vmatmul.mubr.f32.gmra.mrb[0].mxu0 %v1623
      %v1784 = vpop.f32.mrb[0].mxu0
      %v1785 = vadd.f32 %v1663, %v1784
      %v1786 = vpop.f32.mrb[0].mxu0
      %1787 = vmatprep.mubr.f32.mxu0 %v1672
      %1788 = vmatmul.mubr.f32.gmra.mrb[0].mxu0 %v1624
      %v1789 = vpop.f32.mrb[0].mxu0
      %v1790 = vadd.f32 %v1663, %v1789
      %v1791 = vpop.f32.mrb[0].mxu0
      %1792 = vmatprep.mubr.f32.mxu0 %v1675
      %1793 = vmatmul.mubr.f32.gmra.mrb[0].mxu0 %v1625
      %v1794 = vpop.f32.mrb[0].mxu0
      %v1795 = vadd.f32 %v1663, %v1794
      %v1796 = vpop.f32.mrb[0].mxu0
      %1797 = vmatprep.mubr.f32.mxu0 %v1678
      %1798 = vmatmul.mubr.f32.gmra.mrb[0].mxu0 %v1626
      %v1799 = vpop.f32.mrb[0].mxu0
      %v1800 = vadd.f32 %v1663, %v1799
      %v1801 = vpop.f32.mrb[0].mxu0
      %1802 = vmatprep.mubr.f32.mxu0 %v1681
      %1803 = vmatmul.mubr.f32.gmra.mrb[0].mxu0 %v1627
      %v1804 = vpop.f32.mrb[0].mxu0
      %v1805 = vadd.f32 %v1663, %v1804
      %v1806 = vpop.f32.mrb[0].mxu0
      %1807 = vmatprep.mubr.f32.mxu0 %v1684
      %1808 = vmatmul.mubr.f32.gmra.mrb[0].mxu0 %v1628
      %v1809 = vpop.f32.mrb[0].mxu0
      %v1810 = vadd.f32 %v1663, %v1809
      %v1811 = vpop.f32.mrb[0].mxu0
      %1812 = vmatprep.mubr.f32.mxu0 %v1687
      %1813 = vmatmul.mubr.f32.gmra.mrb[0].mxu0 %v1629
      %v1814 = vpop.f32.mrb[0].mxu0
      %v1815 = vadd.f32 %v1663, %v1814
      %v1816 = vpop.f32.mrb[0].mxu0
      %1817 = vmatprep.mubr.f32.mxu0 %v1690
      %1818 = vmatmul.mubr.f32.gmra.mrb[0].mxu0 %v1630
      %v1819 = vpop.f32.mrb[0].mxu0
      %v1820 = vadd.f32 %v1663, %v1819
      %v1821 = vpop.f32.mrb[0].mxu0
      %1822 = vmatprep.mubr.f32.mxu0 %v1693
      %1823 = vmatmul.mubr.f32.gmra.mrb[0].mxu0 %v1631
      %v1824 = vpop.f32.mrb[0].mxu0
      %v1825 = vadd.f32 %v1663, %v1824
      %v1826 = vpop.f32.mrb[0].mxu0
      %1827 = vmatprep.mubr.f32.mxu0 %v1696
      %1828 = vmatmul.mubr.f32.gmra.mrb[0].mxu0 %v1632
      %v1829 = vpop.f32.mrb[0].mxu0
      %v1830 = vadd.f32 %v1663, %v1829
      %v1831 = vpop.f32.mrb[0].mxu0
      %1832 = vmatprep.mubr.f32.mxu0 %v1699
      %1833 = vmatmul.mubr.f32.gmra.mrb[0].mxu0 %v1633
      %v1834 = vpop.f32.mrb[0].mxu0
      %v1835 = vadd.f32 %v1663, %v1834
      %v1836 = vpop.f32.mrb[0].mxu0
      %1837 = vmatprep.mubr.f32.mxu0 %v1702
      %1838 = vmatmul.mubr.f32.gmra.mrb[0].mxu0 %v1634
      %v1839 = vpop.f32.mrb[0].mxu0
      %v1840 = vadd.f32 %v1663, %v1839
      %v1841 = vpop.f32.mrb[0].mxu0
      %1842 = vmatprep.mubr.f32.mxu0 %v1705
      %1843 = vmatmul.mubr.f32.gmra.mrb[0].mxu0 %v1635
      %v1844 = vpop.f32.mrb[0].mxu0
      %v1845 = vadd.f32 %v1663, %v1844
      %v1846 = vpop.f32.mrb[0].mxu0
      %1847 = vmatprep.mubr.f32.mxu0 %v1708
      %1848 = vmatmul.mubr.f32.gmra.mrb[0].mxu0 %v1636
      %v1849 = vpop.f32.mrb[0].mxu0
      %v1850 = vadd.f32 %v1663, %v1849
      %v1851 = vpop.f32.mrb[0].mxu0
      %1852 = vmatprep.mubr.f32.mxu0 %v1711
      %1853 = vmatmul.mubr.f32.gmra.mrb[0].mxu0 %v1637
      %v1854 = vpop.f32.mrb[0].mxu0
      %v1855 = vadd.f32 %v1663, %v1854
      %v1856 = vpop.f32.mrb[0].mxu0
      %1857 = vdwg.mxu0
      %v1858 = vmax.f32 %v1780, 0.0
      %v1859 = vmax.f32 %v1785, 0.0
      %v1860 = vmax.f32 %v1790, 0.0
      %v1861 = vmax.f32 %v1795, 0.0
      %v1862 = vmax.f32 %v1800, 0.0
      %v1863 = vmax.f32 %v1805, 0.0
      %v1864 = vmax.f32 %v1810, 0.0
      %v1865 = vmax.f32 %v1815, 0.0
      %v1866 = vmax.f32 %v1820, 0.0
      %v1867 = vmax.f32 %v1825, 0.0
      %v1868 = vmax.f32 %v1830, 0.0
      %v1869 = vmax.f32 %v1835, 0.0
      %v1870 = vmax.f32 %v1840, 0.0
      %v1871 = vmax.f32 %v1845, 0.0
      %v1872 = vmax.f32 %v1850, 0.0
      %v1873 = vmax.f32 %v1855, 0.0
      %1874 = vst.msk [vmem:[#allocation2 + $0x8] sm:$0xff] %vm336, %v1858
      %1875 = vst.msk [vmem:[#allocation2 + $0x10] sm:$0xff] %vm336, %v1859
      %1876 = vst.msk [vmem:[#allocation2 + $0x28] sm:$0xff] %vm336, %v1860
      %1877 = vst.msk [vmem:[#allocation2 + $0x30] sm:$0xff] %vm336, %v1861
      %1878 = vst.msk [vmem:[#allocation2 + $0x48] sm:$0xff] %vm336, %v1862
      %1879 = vst.msk [vmem:[#allocation2 + $0x50] sm:$0xff] %vm336, %v1863
      %1880 = vst.msk [vmem:[#allocation2 + $0x68] sm:$0xff] %vm336, %v1864
      %1881 = vst.msk [vmem:[#allocation2 + $0x70] sm:$0xff] %vm336, %v1865
      %1882 = vst.msk [vmem:[#allocation2 + $0x88] sm:$0xff] %vm336, %v1866
      %1883 = vst.msk [vmem:[#allocation2 + $0x90] sm:$0xff] %vm336, %v1867
      %1884 = vst.msk [vmem:[#allocation2 + $0xa8] sm:$0xff] %vm336, %v1868
      %1885 = vst.msk [vmem:[#allocation2 + $0xb0] sm:$0xff] %vm336, %v1869
      %1886 = vst.msk [vmem:[#allocation2 + $0xc8] sm:$0xff] %vm336, %v1870
      %1887 = vst.msk [vmem:[#allocation2 + $0xd0] sm:$0xff] %vm336, %v1871
      %1888 = vst.msk [vmem:[#allocation2 + $0xe8] sm:$0xff] %vm336, %v1872
      %1889 = vst.msk [vmem:[#allocation2 + $0xf0] sm:$0xff] %vm336, %v1873
      %v1890 = vld [vmem:[#allocation2 + $0x7] sm:$0xff]
      %v1891 = vld [vmem:[#allocation2 + $0xf] sm:$0xff]
      %v1892 = vld [vmem:[#allocation2 + $0x27] sm:$0xff]
      %v1893 = vld [vmem:[#allocation2 + $0x2f] sm:$0xff]
      %v1894 = vld [vmem:[#allocation2 + $0x47] sm:$0xff]
      %v1895 = vld [vmem:[#allocation2 + $0x4f] sm:$0xff]
      %v1896 = vld [vmem:[#allocation2 + $0x67] sm:$0xff]
      %v1897 = vld [vmem:[#allocation2 + $0x6f] sm:$0xff]
      %v1898 = vld [vmem:[#allocation2 + $0x87] sm:$0xff]
      %v1899 = vld [vmem:[#allocation2 + $0x8f] sm:$0xff]
      %v1900 = vld [vmem:[#allocation2 + $0xa7] sm:$0xff]
      %v1901 = vld [vmem:[#allocation2 + $0xaf] sm:$0xff]
      %v1902 = vld [vmem:[#allocation2 + $0xc7] sm:$0xff]
      %v1903 = vld [vmem:[#allocation2 + $0xcf] sm:$0xff]
      %v1904 = vld [vmem:[#allocation2 + $0xe7] sm:$0xff]
      %v1905 = vld [vmem:[#allocation2 + $0xef] sm:$0xff]
      %v1906 = vld [vmem:[#allocation2 + $0x8] sm:$0xff]
      %v1907 = vld [vmem:[#allocation2 + $0x10] sm:$0xff]
      %v1908 = vld [vmem:[#allocation2 + $0x28] sm:$0xff]
      %v1909 = vld [vmem:[#allocation2 + $0x30] sm:$0xff]
      %v1910 = vld [vmem:[#allocation2 + $0x48] sm:$0xff]
      %v1911 = vld [vmem:[#allocation2 + $0x50] sm:$0xff]
      %v1912 = vld [vmem:[#allocation2 + $0x68] sm:$0xff]
      %v1913 = vld [vmem:[#allocation2 + $0x70] sm:$0xff]
      %v1914 = vld [vmem:[#allocation2 + $0x88] sm:$0xff]
      %v1915 = vld [vmem:[#allocation2 + $0x90] sm:$0xff]
      %v1916 = vld [vmem:[#allocation2 + $0xa8] sm:$0xff]
      %v1917 = vld [vmem:[#allocation2 + $0xb0] sm:$0xff]
      %v1918 = vld [vmem:[#allocation2 + $0xc8] sm:$0xff]
      %v1919 = vld [vmem:[#allocation2 + $0xd0] sm:$0xff]
      %v1920 = vld [vmem:[#allocation2 + $0xe8] sm:$0xff]
      %v1921 = vld [vmem:[#allocation2 + $0xf0] sm:$0xff]
      %v1922 = vld [vmem:[#allocation2 + $0x9] sm:$0xff]
      %v1923 = vld [vmem:[#allocation2 + $0x11] sm:$0xff]
      %v1924 = vld [vmem:[#allocation2 + $0x29] sm:$0xff]
      %v1925 = vld [vmem:[#allocation2 + $0x31] sm:$0xff]
      %v1926 = vld [vmem:[#allocation2 + $0x49] sm:$0xff]
      %v1927 = vld [vmem:[#allocation2 + $0x51] sm:$0xff]
      %v1928 = vld [vmem:[#allocation2 + $0x69] sm:$0xff]
      %v1929 = vld [vmem:[#allocation2 + $0x71] sm:$0xff]
      %v1930 = vld [vmem:[#allocation2 + $0x89] sm:$0xff]
      %v1931 = vld [vmem:[#allocation2 + $0x91] sm:$0xff]
      %v1932 = vld [vmem:[#allocation2 + $0xa9] sm:$0xff]
      %v1933 = vld [vmem:[#allocation2 + $0xb1] sm:$0xff]
      %v1934 = vld [vmem:[#allocation2 + $0xc9] sm:$0xff]
      %v1935 = vld [vmem:[#allocation2 + $0xd1] sm:$0xff]
      %v1936 = vld [vmem:[#allocation2 + $0xe9] sm:$0xff]
      %v1937 = vld [vmem:[#allocation2 + $0xf1] sm:$0xff]
      %1954 = vrot.lane.b32.xlu0 %v1906, 64
      %v1955 = vpop.permute.xlu0 %1954
      %1956 = vrot.lane.b32.xlu0 %v1907, 64
      %v1957 = vpop.permute.xlu0 %1956
      %1958 = vrot.lane.b32.xlu0 %v1908, 64
      %v1959 = vpop.permute.xlu0 %1958
      %1960 = vrot.lane.b32.xlu0 %v1909, 64
      %v1961 = vpop.permute.xlu0 %1960
      %1962 = vrot.lane.b32.xlu0 %v1910, 64
      %v1963 = vpop.permute.xlu0 %1962
      %1964 = vrot.lane.b32.xlu0 %v1911, 64
      %v1965 = vpop.permute.xlu0 %1964
      %1966 = vrot.lane.b32.xlu0 %v1912, 64
      %v1967 = vpop.permute.xlu0 %1966
      %1968 = vrot.lane.b32.xlu0 %v1913, 64
      %v1969 = vpop.permute.xlu0 %1968
      %1970 = vrot.lane.b32.xlu0 %v1914, 64
      %v1971 = vpop.permute.xlu0 %1970
      %1972 = vrot.lane.b32.xlu0 %v1915, 64
      %v1973 = vpop.permute.xlu0 %1972
      %1974 = vrot.lane.b32.xlu0 %v1916, 64
      %v1975 = vpop.permute.xlu0 %1974
      %1976 = vrot.lane.b32.xlu0 %v1917, 64
      %v1977 = vpop.permute.xlu0 %1976
      %1978 = vrot.lane.b32.xlu0 %v1918, 64
      %v1979 = vpop.permute.xlu0 %1978
      %1980 = vrot.lane.b32.xlu0 %v1919, 64
      %v1981 = vpop.permute.xlu0 %1980
      %1982 = vrot.lane.b32.xlu0 %v1920, 64
      %v1983 = vpop.permute.xlu0 %1982
      %1984 = vrot.lane.b32.xlu0 %v1921, 64
      %v1985 = vpop.permute.xlu0 %1984
      %v2002 = vsel %vm336, %v1890, %v1955
      %v2003 = vsel %vm336, %v1891, %v1957
      %v2004 = vsel %vm336, %v1892, %v1959
      %v2005 = vsel %vm336, %v1893, %v1961
      %v2006 = vsel %vm336, %v1894, %v1963
      %v2007 = vsel %vm336, %v1895, %v1965
      %v2008 = vsel %vm336, %v1896, %v1967
      %v2009 = vsel %vm336, %v1897, %v1969
      %v2010 = vsel %vm336, %v1898, %v1971
      %v2011 = vsel %vm336, %v1899, %v1973
      %v2012 = vsel %vm336, %v1900, %v1975
      %v2013 = vsel %vm336, %v1901, %v1977
      %v2014 = vsel %vm336, %v1902, %v1979
      %v2015 = vsel %vm336, %v1903, %v1981
      %v2016 = vsel %vm336, %v1904, %v1983
      %v2017 = vsel %vm336, %v1905, %v1985
      %v2018 = vld [vmem:[%s5] sm:$0xff]
      %v2019 = vld [vmem:[%s5 + $0x8] sm:$0xff]
      %v2020 = vld [vmem:[%s5 + $0x10] sm:$0xff]
      %v2021 = vld [vmem:[%s5 + $0x18] sm:$0xff]
      %v2022 = vld [vmem:[%s5 + $0x20] sm:$0xff]
      %v2023 = vld [vmem:[%s5 + $0x28] sm:$0xff]
      %v2024 = vld [vmem:[%s5 + $0x30] sm:$0xff]
      %v2025 = vld [vmem:[%s5 + $0x38] sm:$0xff]
      %v2026 = vld [vmem:[%s5 + $0x40] sm:$0xff]
      %v2027 = vld [vmem:[%s5 + $0x48] sm:$0xff]
      %v2028 = vld [vmem:[%s5 + $0x50] sm:$0xff]
      %v2029 = vld [vmem:[%s5 + $0x58] sm:$0xff]
      %v2030 = vld [vmem:[%s5 + $0x60] sm:$0xff]
      %v2031 = vld [vmem:[%s5 + $0x68] sm:$0xff]
      %v2032 = vld [vmem:[%s5 + $0x70] sm:$0xff]
      %v2033 = vld [vmem:[%s5 + $0x78] sm:$0xff]
      %v2034 = vld [vmem:[%s5 + $0x80] sm:$0xff]
      %v2035 = vld [vmem:[%s5 + $0x88] sm:$0xff]
      %v2036 = vld [vmem:[%s5 + $0x90] sm:$0xff]
      %v2037 = vld [vmem:[%s5 + $0x98] sm:$0xff]
      %v2038 = vld [vmem:[%s5 + $0xa0] sm:$0xff]
      %v2039 = vld [vmem:[%s5 + $0xa8] sm:$0xff]
      %v2040 = vld [vmem:[%s5 + $0xb0] sm:$0xff]
      %v2041 = vld [vmem:[%s5 + $0xb8] sm:$0xff]
      %v2042 = vld [vmem:[%s6] sm:$0x1]
      %v2044 = vlaneseq
      %v2045 = vshrl.u32 %v2044, 7
      %v2046 = vsub.s32 0, %v2045
      %v2047 = vrot.slane %v2042, %v2046
      %v2050 = vsel %vm336, %v1922, 0
      %v2053 = vsel %vm336, %v1923, 0
      %v2056 = vsel %vm336, %v1924, 0
      %v2059 = vsel %vm336, %v1925, 0
      %v2062 = vsel %vm336, %v1926, 0
      %v2065 = vsel %vm336, %v1927, 0
      %v2068 = vsel %vm336, %v1928, 0
      %v2071 = vsel %vm336, %v1929, 0
      %v2074 = vsel %vm336, %v1930, 0
      %v2077 = vsel %vm336, %v1931, 0
      %v2080 = vsel %vm336, %v1932, 0
      %v2083 = vsel %vm336, %v1933, 0
      %v2086 = vsel %vm336, %v1934, 0
      %v2089 = vsel %vm336, %v1935, 0
      %v2092 = vsel %vm336, %v1936, 0
      %v2095 = vsel %vm336, %v1937, 0
      %2097 = vmatprep.subr.mxu0 0.0
      %2098 = vmatpush1.msra.mxu0 %v2018
      %2099 = vmatprep.subr.mxu0 0.0
      %2100 = vmatpush1.msra.mxu0 %v2019
      %2101 = vmatprep.subr.mxu0 0.0
      %2102 = vmatpush1.msra.mxu0 %v2020
      %2103 = vmatprep.subr.mxu0 0.0
      %2104 = vmatpush1.msra.mxu0 %v2021
      %2105 = vmatprep.subr.mxu0 0.0
      %2106 = vmatpush1.msra.mxu0 %v2022
      %2107 = vmatprep.subr.mxu0 0.0
      %2108 = vmatpush1.msra.mxu0 %v2023
      %2109 = vmatprep.subr.mxu0 0.0
      %2110 = vmatpush1.msra.mxu0 %v2024
      %2111 = vmatprep.subr.mxu0 0.0
      %2112 = vmatpush1.msra.mxu0 %v2025
      %2113 = vmatprep.subr.mxu0 0.0
      %2114 = vmatpush1.msra.mxu0 %v2026
      %2115 = vmatprep.subr.mxu0 0.0
      %2116 = vmatpush1.msra.mxu0 %v2027
      %2117 = vmatprep.subr.mxu0 0.0
      %2118 = vmatpush1.msra.mxu0 %v2028
      %2119 = vmatprep.subr.mxu0 0.0
      %2120 = vmatpush1.msra.mxu0 %v2029
      %2121 = vmatprep.subr.mxu0 0.0
      %2122 = vmatpush1.msra.mxu0 %v2030
      %2123 = vmatprep.subr.mxu0 0.0
      %2124 = vmatpush1.msra.mxu0 %v2031
      %2125 = vmatprep.subr.mxu0 0.0
      %2126 = vmatpush1.msra.mxu0 %v2032
      %2127 = vmatprep.subr.mxu0 0.0
      %2128 = vmatpush1.msra.mxu0 %v2033
      %2129 = vmatprep.subr.mxu0 0.0
      %2130 = vmatpush1.msra.mxu0 %v2034
      %2131 = vmatprep.subr.mxu0 0.0
      %2132 = vmatpush1.msra.mxu0 %v2035
      %2133 = vmatprep.subr.mxu0 0.0
      %2134 = vmatpush1.msra.mxu0 %v2036
      %2135 = vmatprep.subr.mxu0 0.0
      %2136 = vmatpush1.msra.mxu0 %v2037
      %2137 = vmatprep.subr.mxu0 0.0
      %2138 = vmatpush1.msra.mxu0 %v2038
      %2139 = vmatprep.subr.mxu0 0.0
      %2140 = vmatpush1.msra.mxu0 %v2039
      %2141 = vmatprep.subr.mxu0 0.0
      %2142 = vmatpush1.msra.mxu0 %v2040
      %2143 = vmatprep.subr.mxu0 0.0
      %2144 = vmatpush1.msra.mxu0 %v2041
      %2145 = vmatprep.subr.mxu0 0.0
      %2146 = vmatpush1.msra.mxu0 0.0
      %2147 = vmatprep.subr.mxu0 0.0
      %2148 = vmatpush1.msra.mxu0 0.0
      %2149 = vmatprep.subr.mxu0 0.0
      %2150 = vmatpush1.msra.mxu0 0.0
      %2151 = vmatprep.subr.mxu0 0.0
      %2152 = vmatpush1.msra.mxu0 0.0
      %2153 = vmatprep.subr.mxu0 0.0
      %2154 = vmatpush1.msra.mxu0 0.0
      %2155 = vmatprep.subr.mxu0 0.0
      %2156 = vmatpush1.msra.mxu0 0.0
      %2157 = vmatprep.subr.mxu0 0.0
      %2158 = vmatpush1.msra.mxu0 0.0
      %2159 = vmatprep.subr.mxu0 0.0
      %2160 = vmatpush1.msra.mxu0 0.0
      %2161 = vmatprep.mubr.f32.mxu0 %v2050
      %2162 = vmatmul.mubr.f32.gmra.mrb[0].mxu0 %v2002
      %v2163 = vpop.f32.mrb[0].mxu0
      %v2164 = vadd.f32 %v2047, %v2163
      %v2165 = vpop.f32.mrb[0].mxu0
      %2166 = vmatprep.mubr.f32.mxu0 %v2053
      %2167 = vmatmul.mubr.f32.gmra.mrb[0].mxu0 %v2003
      %v2168 = vpop.f32.mrb[0].mxu0
      %v2169 = vadd.f32 %v2047, %v2168
      %v2170 = vpop.f32.mrb[0].mxu0
      %2171 = vmatprep.mubr.f32.mxu0 %v2056
      %2172 = vmatmul.mubr.f32.gmra.mrb[0].mxu0 %v2004
      %v2173 = vpop.f32.mrb[0].mxu0
      %v2174 = vadd.f32 %v2047, %v2173
      %v2175 = vpop.f32.mrb[0].mxu0
      %2176 = vmatprep.mubr.f32.mxu0 %v2059
      %2177 = vmatmul.mubr.f32.gmra.mrb[0].mxu0 %v2005
      %v2178 = vpop.f32.mrb[0].mxu0
      %v2179 = vadd.f32 %v2047, %v2178
      %v2180 = vpop.f32.mrb[0].mxu0
      %2181 = vmatprep.mubr.f32.mxu0 %v2062
      %2182 = vmatmul.mubr.f32.gmra.mrb[0].mxu0 %v2006
      %v2183 = vpop.f32.mrb[0].mxu0
      %v2184 = vadd.f32 %v2047, %v2183
      %v2185 = vpop.f32.mrb[0].mxu0
      %2186 = vmatprep.mubr.f32.mxu0 %v2065
      %2187 = vmatmul.mubr.f32.gmra.mrb[0].mxu0 %v2007
      %v2188 = vpop.f32.mrb[0].mxu0
      %v2189 = vadd.f32 %v2047, %v2188
      %v2190 = vpop.f32.mrb[0].mxu0
      %2191 = vmatprep.mubr.f32.mxu0 %v2068
      %2192 = vmatmul.mubr.f32.gmra.mrb[0].mxu0 %v2008
      %v2193 = vpop.f32.mrb[0].mxu0
      %v2194 = vadd.f32 %v2047, %v2193
      %v2195 = vpop.f32.mrb[0].mxu0
      %2196 = vmatprep.mubr.f32.mxu0 %v2071
      %2197 = vmatmul.mubr.f32.gmra.mrb[0].mxu0 %v2009
      %v2198 = vpop.f32.mrb[0].mxu0
      %v2199 = vadd.f32 %v2047, %v2198
      %v2200 = vpop.f32.mrb[0].mxu0
      %2201 = vmatprep.mubr.f32.mxu0 %v2074
      %2202 = vmatmul.mubr.f32.gmra.mrb[0].mxu0 %v2010
      %v2203 = vpop.f32.mrb[0].mxu0
      %v2204 = vadd.f32 %v2047, %v2203
      %v2205 = vpop.f32.mrb[0].mxu0
      %2206 = vmatprep.mubr.f32.mxu0 %v2077
      %2207 = vmatmul.mubr.f32.gmra.mrb[0].mxu0 %v2011
      %v2208 = vpop.f32.mrb[0].mxu0
      %v2209 = vadd.f32 %v2047, %v2208
      %v2210 = vpop.f32.mrb[0].mxu0
      %2211 = vmatprep.mubr.f32.mxu0 %v2080
      %2212 = vmatmul.mubr.f32.gmra.mrb[0].mxu0 %v2012
      %v2213 = vpop.f32.mrb[0].mxu0
      %v2214 = vadd.f32 %v2047, %v2213
      %v2215 = vpop.f32.mrb[0].mxu0
      %2216 = vmatprep.mubr.f32.mxu0 %v2083
      %2217 = vmatmul.mubr.f32.gmra.mrb[0].mxu0 %v2013
      %v2218 = vpop.f32.mrb[0].mxu0
      %v2219 = vadd.f32 %v2047, %v2218
      %v2220 = vpop.f32.mrb[0].mxu0
      %2221 = vmatprep.mubr.f32.mxu0 %v2086
      %2222 = vmatmul.mubr.f32.gmra.mrb[0].mxu0 %v2014
      %v2223 = vpop.f32.mrb[0].mxu0
      %v2224 = vadd.f32 %v2047, %v2223
      %v2225 = vpop.f32.mrb[0].mxu0
      %2226 = vmatprep.mubr.f32.mxu0 %v2089
      %2227 = vmatmul.mubr.f32.gmra.mrb[0].mxu0 %v2015
      %v2228 = vpop.f32.mrb[0].mxu0
      %v2229 = vadd.f32 %v2047, %v2228
      %v2230 = vpop.f32.mrb[0].mxu0
      %2231 = vmatprep.mubr.f32.mxu0 %v2092
      %2232 = vmatmul.mubr.f32.gmra.mrb[0].mxu0 %v2016
      %v2233 = vpop.f32.mrb[0].mxu0
      %v2234 = vadd.f32 %v2047, %v2233
      %v2235 = vpop.f32.mrb[0].mxu0
      %2236 = vmatprep.mubr.f32.mxu0 %v2095
      %2237 = vmatmul.mubr.f32.gmra.mrb[0].mxu0 %v2017
      %v2238 = vpop.f32.mrb[0].mxu0
      %v2239 = vadd.f32 %v2047, %v2238
      %v2240 = vpop.f32.mrb[0].mxu0
      %2241 = vdwg.mxu0
      %v2242 = vmax.f32 %v2164, 0.0
      %v2243 = vmax.f32 %v2169, 0.0
      %v2244 = vmax.f32 %v2174, 0.0
      %v2245 = vmax.f32 %v2179, 0.0
      %v2246 = vmax.f32 %v2184, 0.0
      %v2247 = vmax.f32 %v2189, 0.0
      %v2248 = vmax.f32 %v2194, 0.0
      %v2249 = vmax.f32 %v2199, 0.0
      %v2250 = vmax.f32 %v2204, 0.0
      %v2251 = vmax.f32 %v2209, 0.0
      %v2252 = vmax.f32 %v2214, 0.0
      %v2253 = vmax.f32 %v2219, 0.0
      %v2254 = vmax.f32 %v2224, 0.0
      %v2255 = vmax.f32 %v2229, 0.0
      %v2256 = vmax.f32 %v2234, 0.0
      %v2257 = vmax.f32 %v2239, 0.0
      %v2258 = vsel %vm1091, %v2242, 0.0
      %v2259 = vsel %vm1091, %v2243, 0.0
      %v2260 = vadd.f32 %v2258, %v2259
      %v2261 = vrot.slane %v2260, 4
      %v2262 = vadd.f32 %v2260, %v2261
      %v2263 = vrot.slane %v2262, 2
      %v2264 = vadd.f32 %v2262, %v2263
      %v2265 = vrot.slane %v2264, 1
      %v2266 = vadd.f32 %v2264, %v2265
      %v2267 = vsel %vm1091, %v2244, 0.0
      %v2268 = vsel %vm1091, %v2245, 0.0
      %v2269 = vadd.f32 %v2267, %v2268
      %v2270 = vrot.slane %v2269, 4
      %v2271 = vadd.f32 %v2269, %v2270
      %v2272 = vrot.slane %v2271, 2
      %v2273 = vadd.f32 %v2271, %v2272
      %v2274 = vrot.slane %v2273, 1
      %v2275 = vadd.f32 %v2273, %v2274
      %v2276 = vsel %vm1091, %v2246, 0.0
      %v2277 = vsel %vm1091, %v2247, 0.0
      %v2278 = vadd.f32 %v2276, %v2277
      %v2279 = vrot.slane %v2278, 4
      %v2280 = vadd.f32 %v2278, %v2279
      %v2281 = vrot.slane %v2280, 2
      %v2282 = vadd.f32 %v2280, %v2281
      %v2283 = vrot.slane %v2282, 1
      %v2284 = vadd.f32 %v2282, %v2283
      %v2285 = vsel %vm1091, %v2248, 0.0
      %v2286 = vsel %vm1091, %v2249, 0.0
      %v2287 = vadd.f32 %v2285, %v2286
      %v2288 = vrot.slane %v2287, 4
      %v2289 = vadd.f32 %v2287, %v2288
      %v2290 = vrot.slane %v2289, 2
      %v2291 = vadd.f32 %v2289, %v2290
      %v2292 = vrot.slane %v2291, 1
      %v2293 = vadd.f32 %v2291, %v2292
      %v2294 = vsel %vm1091, %v2250, 0.0
      %v2295 = vsel %vm1091, %v2251, 0.0
      %v2296 = vadd.f32 %v2294, %v2295
      %v2297 = vrot.slane %v2296, 4
      %v2298 = vadd.f32 %v2296, %v2297
      %v2299 = vrot.slane %v2298, 2
      %v2300 = vadd.f32 %v2298, %v2299
      %v2301 = vrot.slane %v2300, 1
      %v2302 = vadd.f32 %v2300, %v2301
      %v2303 = vsel %vm1091, %v2252, 0.0
      %v2304 = vsel %vm1091, %v2253, 0.0
      %v2305 = vadd.f32 %v2303, %v2304
      %v2306 = vrot.slane %v2305, 4
      %v2307 = vadd.f32 %v2305, %v2306
      %v2308 = vrot.slane %v2307, 2
      %v2309 = vadd.f32 %v2307, %v2308
      %v2310 = vrot.slane %v2309, 1
      %v2311 = vadd.f32 %v2309, %v2310
      %v2312 = vsel %vm1091, %v2254, 0.0
      %v2313 = vsel %vm1091, %v2255, 0.0
      %v2314 = vadd.f32 %v2312, %v2313
      %v2315 = vrot.slane %v2314, 4
      %v2316 = vadd.f32 %v2314, %v2315
      %v2317 = vrot.slane %v2316, 2
      %v2318 = vadd.f32 %v2316, %v2317
      %v2319 = vrot.slane %v2318, 1
      %v2320 = vadd.f32 %v2318, %v2319
      %v2321 = vsel %vm1091, %v2256, 0.0
      %v2322 = vsel %vm1091, %v2257, 0.0
      %v2323 = vadd.f32 %v2321, %v2322
      %v2324 = vrot.slane %v2323, 4
      %v2325 = vadd.f32 %v2323, %v2324
      %v2326 = vrot.slane %v2325, 2
      %v2327 = vadd.f32 %v2325, %v2326
      %v2328 = vrot.slane %v2327, 1
      %v2329 = vadd.f32 %v2327, %v2328
      %v2330 = vrcp.pop 16.0
      %v2331 = vmul.f32 %v2266, %v2330
      %v2332 = vmul.f32 %v2275, %v2330
      %v2333 = vmul.f32 %v2284, %v2330
      %v2334 = vmul.f32 %v2293, %v2330
      %v2335 = vmul.f32 %v2302, %v2330
      %v2336 = vmul.f32 %v2311, %v2330
      %v2337 = vmul.f32 %v2320, %v2330
      %v2338 = vmul.f32 %v2329, %v2330
      %v2339 = vld [vmem:[%s7] sm:$0x1f]
      %v2340 = vmul.f32 %v2331, %v2339
      %v2341 = vmul.f32 %v2332, %v2339
      %v2342 = vmul.f32 %v2333, %v2339
      %v2343 = vmul.f32 %v2334, %v2339
      %v2344 = vmul.f32 %v2335, %v2339
      %v2345 = vmul.f32 %v2336, %v2339
      %v2346 = vmul.f32 %v2337, %v2339
      %v2347 = vmul.f32 %v2338, %v2339
      %vm2348 = vcmask 258048
      %v2349 = vsel %vm2348, %v2340, 0.0
      %2350 = vadd.xlane.f32.xlu0 %v2349
      %v2351 = vpop.xlane.xlu0 %2350
      %v2352 = vsel %vm2348, %v2341, 0.0
      %2353 = vadd.xlane.f32.xlu0 %v2352
      %v2354 = vpop.xlane.xlu0 %2353
      %v2355 = vsel %vm2348, %v2342, 0.0
      %2356 = vadd.xlane.f32.xlu0 %v2355
      %v2357 = vpop.xlane.xlu0 %2356
      %v2358 = vsel %vm2348, %v2343, 0.0
      %2359 = vadd.xlane.f32.xlu0 %v2358
      %v2360 = vpop.xlane.xlu0 %2359
      %v2361 = vsel %vm2348, %v2344, 0.0
      %2362 = vadd.xlane.f32.xlu0 %v2361
      %v2363 = vpop.xlane.xlu0 %2362
      %v2364 = vsel %vm2348, %v2345, 0.0
      %2365 = vadd.xlane.f32.xlu0 %v2364
      %v2366 = vpop.xlane.xlu0 %2365
      %v2367 = vsel %vm2348, %v2346, 0.0
      %2368 = vadd.xlane.f32.xlu0 %v2367
      %v2369 = vpop.xlane.xlu0 %2368
      %v2370 = vsel %vm2348, %v2347, 0.0
      %2371 = vadd.xlane.f32.xlu0 %v2370
      %v2372 = vpop.xlane.xlu0 %2371
      %v2373 = vld [vmem:[%s8] sm:$0x1]
      %v2375 = vlaneseq
      %v2376 = vshrl.u32 %v2375, 7
      %v2377 = vsub.s32 0, %v2376
      %v2378 = vrot.slane %v2373, %v2377
      %2380 = vbcast.lane.b32.xlu0 %v2378, 256
      %v2381 = vpop.permute.xlu0 %2380
      %v2383 = vadd.f32 %v2351, %v2381
      %v2384 = vadd.f32 %v2354, %v2381
      %v2385 = vadd.f32 %v2357, %v2381
      %v2386 = vadd.f32 %v2360, %v2381
      %v2387 = vadd.f32 %v2363, %v2381
      %v2388 = vadd.f32 %v2366, %v2381
      %v2389 = vadd.f32 %v2369, %v2381
      %v2390 = vadd.f32 %v2372, %v2381
      %2399 = vset.pattern.permute.xlu0 0
      %2400 = vperm.xlu0 %2399, %v2383
      %v2401 = vpop.permute.xlu0 %2400
      %2402 = vset.pattern.permute.xlu0 0
      %2403 = vperm.xlu0 %2402, %v2384
      %v2404 = vpop.permute.xlu0 %2403
      %2405 = vset.pattern.permute.xlu0 0
      %2406 = vperm.xlu0 %2405, %v2385
      %v2407 = vpop.permute.xlu0 %2406
      %2408 = vset.pattern.permute.xlu0 0
      %2409 = vperm.xlu0 %2408, %v2386
      %v2410 = vpop.permute.xlu0 %2409
      %2411 = vset.pattern.permute.xlu0 0
      %2412 = vperm.xlu0 %2411, %v2387
      %v2413 = vpop.permute.xlu0 %2412
      %2414 = vset.pattern.permute.xlu0 0
      %2415 = vperm.xlu0 %2414, %v2388
      %v2416 = vpop.permute.xlu0 %2415
      %2417 = vset.pattern.permute.xlu0 0
      %2418 = vperm.xlu0 %2417, %v2389
      %v2419 = vpop.permute.xlu0 %2418
      %2420 = vset.pattern.permute.xlu0 0
      %2421 = vperm.xlu0 %2420, %v2390
      %v2422 = vpop.permute.xlu0 %2421
      %v2423 = vlaneseq
      %v2424 = vand.u32 %v2423, 127
      %v2425 = vlaneseq
      %v2426 = vshrl.u32 %v2425, 7
      %v2427 = vsub.s32 %v2424, %v2426
      %v2428 = vrot.slane %v2401, %v2427
      %v2429 = vlaneseq
      %v2430 = vshrl.u32 %v2429, 7
      %v2431 = vsub.s32 %v2424, %v2430
      %v2432 = vrot.slane %v2404, %v2431
      %v2433 = vlaneseq
      %v2434 = vshrl.u32 %v2433, 7
      %v2435 = vsub.s32 %v2424, %v2434
      %v2436 = vrot.slane %v2407, %v2435
      %v2437 = vlaneseq
      %v2438 = vshrl.u32 %v2437, 7
      %v2439 = vsub.s32 %v2424, %v2438
      %v2440 = vrot.slane %v2410, %v2439
      %v2441 = vlaneseq
      %v2442 = vshrl.u32 %v2441, 7
      %v2443 = vsub.s32 %v2424, %v2442
      %v2444 = vrot.slane %v2413, %v2443
      %v2445 = vlaneseq
      %v2446 = vshrl.u32 %v2445, 7
      %v2447 = vsub.s32 %v2424, %v2446
      %v2448 = vrot.slane %v2416, %v2447
      %v2449 = vlaneseq
      %v2450 = vshrl.u32 %v2449, 7
      %v2451 = vsub.s32 %v2424, %v2450
      %v2452 = vrot.slane %v2419, %v2451
      %v2453 = vlaneseq
      %v2454 = vshrl.u32 %v2453, 7
      %v2455 = vsub.s32 %v2424, %v2454
      %v2456 = vrot.slane %v2422, %v2455
      %vm2457 = vcmask 1041409
      %v2458 = vsel %vm2457, %v2432, %v2428
      %vm2459 = vcmask 1042434
      %v2460 = vsel %vm2459, %v2436, %v2458
      %vm2461 = vcmask 1043459
      %v2462 = vsel %vm2461, %v2440, %v2460
      %vm2463 = vcmask 1044484
      %v2464 = vsel %vm2463, %v2444, %v2462
      %vm2465 = vcmask 1045509
      %v2466 = vsel %vm2465, %v2448, %v2464
      %vm2467 = vcmask 1046534
      %v2468 = vsel %vm2467, %v2452, %v2466
      %vm2469 = vcmask 1047559
      %v2470 = vsel %vm2469, %v2456, %v2468
      %vm2472 = vcmask 39936
      %2473 = vst.msk [vmem:[%s335] sm:$0xff] %vm2472, %v2470
      %p2474 = scmp.lt.s32.totalorder %s20, 1
      %s2475 = scalar_select %p2474, %s20, 1
      %s2476 = smul.addr %s2475, 8
      %s2477 = scalar_lea.vmem %s9, %s2476
      // Predicated region
      $region57: #{tpu_custom_call.1} parent=55 // pred_check
        %p2478 = pneg %p232
      $region58: #{tpu_custom_call.1} parent=55 // pred_check_branch
        %2480 = sbr.rel (%p2478) target = $region60
      $region59: #{tpu_custom_call.1} parent=55 // pred_region
        _
      $region60: #{tpu_custom_call.1} parent=55 // pred_fallthru
        _
    $region56: #{tpu_custom_call.1} parent=5 // pred_fallthru
      _
    %p2481 = scmp.le.s32.totalorder 2, %s15
    // Predicated region
    $region61: #{tpu_custom_call.1} parent=5 // pred_check
      %p2482 = pneg %p2481
    $region62: #{tpu_custom_call.1} parent=5 // pred_check_branch
      %2484 = sbr.rel (%p2482) target = $region64
    $region63: #{tpu_custom_call.1} parent=5 // pred_region
      %s2485 = ssub.s32 %s15, 2
      // Predicated region
      $region65: #{tpu_custom_call.1} parent=63 // pred_check
        %p2486 = pneg %p238
      $region66: #{tpu_custom_call.1} parent=63 // pred_check_branch
        %2488 = sbr.rel (%p2486) target = $region68
      $region67: #{tpu_custom_call.1} parent=63 // pred_region
        %p2489 = scmp.lt.s32.totalorder %s21, 1
        %s2490 = scalar_select %p2489, %s21, 1
        %s2491 = smul.addr %s2490, 8
        %s2492 = scalar_lea.vmem %s9, %s2491
      $region68: #{tpu_custom_call.1} parent=63 // pred_fallthru
        _
    $region64: #{tpu_custom_call.1} parent=5 // pred_fallthru
      _
  $region6: #{tpu_custom_call.1} parent=0 // loop_footer
    %s19 = sadd.s32 1, %s15
  $region7: #{tpu_custom_call.1} parent=0 // loop_footer_branch
    %14 = sbr.rel target = $region3
  $region8: #{tpu_custom_call.1} parent=0 // loop_exit
    _

</llo_original>
